<compile_context>
chip_gen: v5e
topology: v5e:2x2
jax: 0.10.0
libtpu: 0.0.40
codegen_flags: <defaults>
</compile_context>

<pallas_src>
import numpy as np
import jax
import jax.numpy as jnp
from jax import lax
from jax.experimental import pallas as pl
from jax.experimental.pallas import tpu as pltpu

EPS = 1e-5
LANE = 128


def _round_up(x, m):
    return (x + m - 1) // m * m


def _make_kernel(scale, K, D, Cs, C, pad, Lw, Lp):
    def kernel(xp_ref, mask_ref, wst_ref, bst_ref, ast_ref, cst_ref,
               af_ref, cf_ref, out_ref, ext_ref):
        # Persistent VMEM scratch for the chained groups: zero it so its halo
        # margins are exactly 0 (the middle is overwritten each group).
        ext_ref[...] = jnp.zeros((Cs, Lp), dtype=jnp.float32)

        x = xp_ref[0]                        # (C, Lp)  packed, zero-haloed input
        mask = mask_ref[...]                 # (Cs, Lw) 1.0 at valid output lanes
        af = af_ref[...]                     # (C, 1)   final folded BN scale
        cf = cf_ref[...]                     # (C, 1)   final folded BN shift

        # ---- chunk 0: passthrough -> final ReLU + folded BN -----------------
        x0 = x[0:Cs, pad:pad + Lw]
        out_ref[0, 0:Cs, :] = jnp.maximum(x0, 0.0) * af[0:Cs] + cf[0:Cs]

        prev = None
        for i in range(1, scale):            # static, sequential res2 chain
            j = i - 1
            r0 = i * Cs
            xrow = x[r0:r0 + Cs, :]          # (Cs, Lp) this chunk, zero halos
            if i == 1:
                ext = xrow                   # already extended + zero padded
            else:
                # temp_x = chunk_i + y[i-1]; re-zero the per-sample pad lanes
                # so the dilated taps see proper zero padding, then write it
                # into the middle of the persistent extended scratch.
                temp = (xrow[:, pad:pad + Lw] + prev) * mask
                ext_ref[:, pad:pad + Lw] = temp
                ext = ext_ref[...]           # (Cs, Lp) extended temp_x

            # ---- one fused matmul: K dilated taps + pointwise branch --------
            pieces = [ext[:, k * D:k * D + Lw] for k in range(K)]
            pieces.append(ext[:, pad:pad + Lw])
            rhs = jnp.concatenate(pieces, axis=0)        # ((K+1)*Cs, Lw)
            res = jnp.dot(wst_ref[j], rhs,
                          preferred_element_type=jnp.float32)   # (2*Cs, Lw)

            # conv bias -> ReLU -> folded BN affine, both branches at once
            h = jnp.maximum(res + bst_ref[j], 0.0) * ast_ref[j] + cst_ref[j]
            yi = h[0:Cs, :] + h[Cs:2 * Cs, :]            # (Cs, Lw)

            # ---- final ReLU + folded BN, written straight to the output -----
            out_ref[0, r0:r0 + Cs, :] = (jnp.maximum(yi, 0.0) * af[r0:r0 + Cs]
                                         + cf[r0:r0 + Cs])
            prev = yi

    return kernel


def res2conv1d_relu_bn(x, params, *, K, D, scale, samples_per_block=None):
    N, C, T = x.shape
    Cs = C // scale
    pad = D * (K - 1) // 2
    nb = N if samples_per_block is None else samples_per_block
    assert N % nb == 0
    nblk = N // nb
    S = T + 2 * pad                       # per-sample slot (data + halos)
    Lw = _round_up(nb * S, LANE)          # lane-dense working width
    Lp = Lw + 2 * pad                     # + global halo for shifted slices

    # ---- pack (N, C, T) -> (nblk, C, Lp): batch folded into the lane axis ---
    xp = jnp.pad(x, ((0, 0), (0, 0), (pad, pad)))                   # (N, C, S)
    xp = xp.reshape(nblk, nb, C, S).transpose(0, 2, 1, 3)
    xp = xp.reshape(nblk, C, nb * S)
    xp = jnp.pad(xp, ((0, 0), (0, 0), (pad, Lp - pad - nb * S)))    # (nblk,C,Lp)

    # valid-output lane mask (window coordinates)
    col = np.arange(Lw)
    loc = col % S
    valid = (col < nb * S) & (loc >= pad) & (loc < pad + T)
    mask = jnp.asarray(np.repeat(valid.astype(np.float32)[None, :], Cs, axis=0))

    kernel = _make_kernel(scale, K, D, Cs, C, pad, Lw, Lp)

    grid_spec = pltpu.PrefetchScalarGridSpec(
        num_scalar_prefetch=0,
        grid=(nblk,),
        in_specs=[
            pl.BlockSpec((1, C, Lp), lambda n: (n, 0, 0)),            # xp
            pl.BlockSpec(mask.shape, lambda n: (0, 0)),               # mask
            pl.BlockSpec(params["wst"].shape, lambda n: (0, 0, 0)),   # wst
            pl.BlockSpec(params["bst"].shape, lambda n: (0, 0, 0)),   # bst
            pl.BlockSpec(params["ast"].shape, lambda n: (0, 0, 0)),   # ast
            pl.BlockSpec(params["cst"].shape, lambda n: (0, 0, 0)),   # cst
            pl.BlockSpec(params["af"].shape, lambda n: (0, 0)),       # af
            pl.BlockSpec(params["cf"].shape, lambda n: (0, 0)),       # cf
        ],
        out_specs=pl.BlockSpec((1, C, Lw), lambda n: (n, 0, 0)),
        scratch_shapes=[pltpu.VMEM((Cs, Lp), jnp.float32)],
    )
    out_packed = pl.pallas_call(
        kernel,
        out_shape=jax.ShapeDtypeStruct((nblk, C, Lw), jnp.float32),
        grid_spec=grid_spec,
        compiler_params=pltpu.CompilerParams(
            dimension_semantics=("parallel",)),
    )(xp, mask, params["wst"], params["bst"], params["ast"], params["cst"],
      params["af"], params["cf"])

    # ---- unpack: keep only valid lanes, restore (N, C, T) -------------------
    out = out_packed[:, :, :nb * S].reshape(nblk, C, nb, S)[..., pad:pad + T]
    out = out.transpose(0, 2, 1, 3).reshape(N, C, T)
    return out


# ------------------------- parameters & reference ---------------------------

def init_raw(key, C, K, scale):
    Cs = C // scale
    S1 = scale - 1
    ks = iter(jax.random.split(key, 32))

    def nrm(shape, s=0.1):
        return s * jax.random.normal(next(ks), shape, dtype=jnp.float32)

    def pos(shape):
        return 0.5 + jax.random.uniform(next(ks), shape, dtype=jnp.float32)

    return dict(
        # layer0: Conv1d(Cs, Cs, K, dilation=D) + BN
        w0=nrm((S1, Cs, Cs, K)), b0=nrm((S1, Cs)),
        g0=pos((S1, Cs)), be0=nrm((S1, Cs)), m0=nrm((S1, Cs)), v0=pos((S1, Cs)),
        # layer1: Conv1d(Cs, Cs, 1) + BN
        w1=nrm((S1, Cs, Cs)), b1=nrm((S1, Cs)),
        g1=pos((S1, Cs)), be1=nrm((S1, Cs)), m1=nrm((S1, Cs)), v1=pos((S1, Cs)),
        # final BN over out_channels
        gf=pos((C,)), bef=nrm((C,)), mf=nrm((C,)), vf=pos((C,)),
    )


def fold_params(raw):
    """Fold BN to per-channel affine and pre-stack the fused group weights."""
    def ac(g, be, m, v):
        a = g / jnp.sqrt(v + EPS)
        return a, be - m * a

    a0, c0 = ac(raw["g0"], raw["be0"], raw["m0"], raw["v0"])
    a1, c1 = ac(raw["g1"], raw["be1"], raw["m1"], raw["v1"])
    af, cf = ac(raw["gf"], raw["bef"], raw["mf"], raw["vf"])

    w0 = raw["w0"]                              # (S1, Cs, Cs, K)
    S1, Cs, _, K = w0.shape
    zeros = jnp.zeros((S1, Cs, Cs), dtype=w0.dtype)
    # stacked weight (S1, 2*Cs, (K+1)*Cs):
    #   rows [0, Cs)   = dilated branch, column block k multiplies tap-k slice
    #   rows [Cs, 2Cs) = 1x1 branch, column block K multiplies the raw input
    top = jnp.concatenate([w0[..., k] for k in range(K)] + [zeros], axis=-1)
    bot = jnp.concatenate([zeros] * K + [raw["w1"]], axis=-1)
    wst = jnp.concatenate([top, bot], axis=1)

    bst = jnp.concatenate([raw["b0"], raw["b1"]], axis=1)[..., None]
    ast = jnp.concatenate([a0, a1], axis=1)[..., None]
    cst = jnp.concatenate([c0, c1], axis=1)[..., None]
    return dict(wst=wst, bst=bst, ast=ast, cst=cst,
                af=af[:, None], cf=cf[:, None])


def ref_forward(x, raw, K, D, scale):
    """Pure-JAX reference (lax.conv) mirroring the PyTorch forward."""
    N, C, T = x.shape
    Cs = C // scale
    pad = D * (K - 1) // 2

    def conv1d(xc, w, b, dil, p):
        out = lax.conv_general_dilated(
            xc, w, window_strides=(1,), padding=[(p, p)],
            rhs_dilation=(dil,), dimension_numbers=("NCH", "OIH", "NCH"))
        return out + b[None, :, None]

    def bn(h, g, be, m, v):
        return (h - m[None, :, None]) / jnp.sqrt(v[None, :, None] + EPS) \
            * g[None, :, None] + be[None, :, None]

    ys = []
    for i in range(scale):
        tx = x[:, i * Cs:(i + 1) * Cs, :]
        if i == 0:
            ty = tx
        else:
            if i >= 2:
                tx = tx + ys[i - 1]
            j = i - 1
            h0 = conv1d(tx, raw["w0"][j], raw["b0"][j], D, pad)
            h0 = bn(jax.nn.relu(h0), raw["g0"][j], raw["be0"][j],
                    raw["m0"][j], raw["v0"][j])
            h1 = conv1d(tx, raw["w1"][j][:, :, None], raw["b1"][j], 1, 0)
            h1 = bn(jax.nn.relu(h1), raw["g1"][j], raw["be1"][j],
                    raw["m1"][j], raw["v1"][j])
            ty = h0 + h1
        ys.append(ty)
    y = jnp.concatenate(ys, axis=1)
    return bn(jax.nn.relu(y), raw["gf"], raw["bef"], raw["mf"], raw["vf"])


if __name__ == "__main__":
    N, C, T = 2, 64, 16          # in_channels = out_channels = 64
    K, D, scale = 3, 2, 8        # chunk width Cs = 8

    key = jax.random.PRNGKey(0)
    kx, kp = jax.random.split(key)
    x = jax.random.normal(kx, (N, C, T), dtype=jnp.float32)
    raw = init_raw(kp, C, K, scale)
    params = fold_params(raw)

    out = res2conv1d_relu_bn(x, params, K=K, D=D, scale=scale)
    out = jax.block_until_ready(out)

    ref = ref_forward(x, raw, K, D, scale)
    assert out.shape == (N, C, T)
    assert np.allclose(np.asarray(out), np.asarray(ref), rtol=1e-4, atol=1e-4)
    print("KERNEL_OK")
</pallas_src>

<mosaic_0001>
module attributes {stable_mosaic.version = 11 : i64} {
  func.func @kernel(%arg0: i32, %arg1: memref<1x64x132xf32, #tpu.memory_space<vmem>>, %arg2: memref<8x128xf32, #tpu.memory_space<vmem>>, %arg3: memref<7x16x32xf32, #tpu.memory_space<vmem>>, %arg4: memref<7x16x1xf32, #tpu.memory_space<vmem>>, %arg5: memref<7x16x1xf32, #tpu.memory_space<vmem>>, %arg6: memref<7x16x1xf32, #tpu.memory_space<vmem>>, %arg7: memref<64x1xf32, #tpu.memory_space<vmem>>, %arg8: memref<64x1xf32, #tpu.memory_space<vmem>>, %arg9: memref<1x64x128xf32, #tpu.memory_space<vmem>>, %arg10: memref<8x132xf32, #tpu.memory_space<vmem>>) attributes {dimension_semantics = [#tpu.dimension_semantics<parallel>], iteration_bounds = array<i64: 1>, scalar_prefetch = 0 : i64, scratch_operands = 1 : i64, tpu.core_type = #tpu.core_type<tc>, window_params = [{transform_indices = @transform_0, window_bounds = array<i64: 1, 64, 132>}, {pipeline_mode = #tpu.pipeline_mode<synchronous>, transform_indices = @transform_1, window_bounds = array<i64: 8, 128>}, {pipeline_mode = #tpu.pipeline_mode<synchronous>, transform_indices = @transform_2, window_bounds = array<i64: 7, 16, 32>}, {pipeline_mode = #tpu.pipeline_mode<synchronous>, transform_indices = @transform_3, window_bounds = array<i64: 7, 16, 1>}, {pipeline_mode = #tpu.pipeline_mode<synchronous>, transform_indices = @transform_4, window_bounds = array<i64: 7, 16, 1>}, {pipeline_mode = #tpu.pipeline_mode<synchronous>, transform_indices = @transform_5, window_bounds = array<i64: 7, 16, 1>}, {pipeline_mode = #tpu.pipeline_mode<synchronous>, transform_indices = @transform_6, window_bounds = array<i64: 64, 1>}, {pipeline_mode = #tpu.pipeline_mode<synchronous>, transform_indices = @transform_7, window_bounds = array<i64: 64, 1>}, {transform_indices = @transform_8, window_bounds = array<i64: 1, 64, 128>}]} {
    %cst = arith.constant 0.000000e+00 : f32
    %0 = vector.broadcast %cst : f32 to vector<8x132xf32>
    %c0 = arith.constant 0 : index
    %c0_0 = arith.constant 0 : index
    %1 = vector.load %arg10[%c0, %c0_0] : memref<8x132xf32, #tpu.memory_space<vmem>>, vector<8x132xf32>
    tpu.vector_store %arg10[%c0, %c0_0], %0 {strides = array<i32>} : memref<8x132xf32, #tpu.memory_space<vmem>>, vector<8x132xf32>,
    %c0_1 = arith.constant 0 : index
    %c0_2 = arith.constant 0 : index
    %c0_3 = arith.constant 0 : index
    %2 = vector.load %arg1[%c0_1, %c0_2, %c0_3] : memref<1x64x132xf32, #tpu.memory_space<vmem>>, vector<1x64x132xf32>
    %3 = vector.shape_cast %2 : vector<1x64x132xf32> to vector<64x132xf32>
    %c0_4 = arith.constant 0 : index
    %c0_5 = arith.constant 0 : index
    %4 = vector.load %arg2[%c0_4, %c0_5] : memref<8x128xf32, #tpu.memory_space<vmem>>, vector<8x128xf32>
    %c0_6 = arith.constant 0 : index
    %c0_7 = arith.constant 0 : index
    %5 = vector.load %arg7[%c0_6, %c0_7] : memref<64x1xf32, #tpu.memory_space<vmem>>, vector<64x1xf32>
    %c0_8 = arith.constant 0 : index
    %c0_9 = arith.constant 0 : index
    %6 = vector.load %arg8[%c0_8, %c0_9] : memref<64x1xf32, #tpu.memory_space<vmem>>, vector<64x1xf32>
    %7 = vector.extract_strided_slice %3 {offsets = [0, 2], sizes = [8, 128], strides = [1, 1]} : vector<64x132xf32> to vector<8x128xf32>
    %cst_10 = arith.constant 0.000000e+00 : f32
    %8 = vector.broadcast %cst_10 : f32 to vector<8x128xf32>
    %9 = arith.maximumf %7, %8 : vector<8x128xf32>
    %10 = vector.extract_strided_slice %5 {offsets = [0, 0], sizes = [8, 1], strides = [1, 1]} : vector<64x1xf32> to vector<8x1xf32>
    %11 = vector.broadcast %10 : vector<8x1xf32> to vector<8x128xf32>
    %12 = arith.mulf %9, %11 : vector<8x128xf32>
    %13 = vector.extract_strided_slice %6 {offsets = [0, 0], sizes = [8, 1], strides = [1, 1]} : vector<64x1xf32> to vector<8x1xf32>
    %14 = vector.broadcast %13 : vector<8x1xf32> to vector<8x128xf32>
    %15 = arith.addf %12, %14 : vector<8x128xf32>
    %c0_11 = arith.constant 0 : index
    %c0_12 = arith.constant 0 : index
    %c0_13 = arith.constant 0 : index
    %16 = vector.load %arg9[%c0_11, %c0_12, %c0_13] : memref<1x64x128xf32, #tpu.memory_space<vmem>>, vector<1x8x128xf32>
    %17 = vector.shape_cast %16 : vector<1x8x128xf32> to vector<8x128xf32>
    %18 = vector.shape_cast %15 : vector<8x128xf32> to vector<1x8x128xf32>
    tpu.vector_store %arg9[%c0_11, %c0_12, %c0_13], %18 {strides = array<i32>} : memref<1x64x128xf32, #tpu.memory_space<vmem>>, vector<1x8x128xf32>,
    %19 = vector.extract_strided_slice %3 {offsets = [8, 0], sizes = [8, 132], strides = [1, 1]} : vector<64x132xf32> to vector<8x132xf32>
    %20 = vector.extract_strided_slice %19 {offsets = [0, 0], sizes = [8, 128], strides = [1, 1]} : vector<8x132xf32> to vector<8x128xf32>
    %21 = vector.extract_strided_slice %19 {offsets = [0, 2], sizes = [8, 128], strides = [1, 1]} : vector<8x132xf32> to vector<8x128xf32>
    %22 = vector.extract_strided_slice %19 {offsets = [0, 4], sizes = [8, 128], strides = [1, 1]} : vector<8x132xf32> to vector<8x128xf32>
    %23 = vector.extract_strided_slice %19 {offsets = [0, 2], sizes = [8, 128], strides = [1, 1]} : vector<8x132xf32> to vector<8x128xf32>
    %24 = tpu.concatenate %20, %21, %22, %23 in 0 : vector<8x128xf32>, vector<8x128xf32>, vector<8x128xf32>, vector<8x128xf32> -> vector<32x128xf32>
    %c0_14 = arith.constant 0 : index
    %c0_15 = arith.constant 0 : index
    %c0_16 = arith.constant 0 : index
    %25 = vector.load %arg3[%c0_14, %c0_15, %c0_16] : memref<7x16x32xf32, #tpu.memory_space<vmem>>, vector<1x16x32xf32>
    %26 = vector.shape_cast %25 : vector<1x16x32xf32> to vector<16x32xf32>
    %cst_17 = arith.constant dense<0.000000e+00> : vector<16x128xf32>
    %27 = tpu.matmul %26, %24, %cst_17 {dimension_numbers = #tpu.dot_dimension_numbers<[1], [0], [0], [1], [0, 0, 1, 1], [], []>} : vector<16x32xf32>, vector<32x128xf32>, vector<16x128xf32> -> vector<16x128xf32>
    %c0_18 = arith.constant 0 : index
    %c0_19 = arith.constant 0 : index
    %c0_20 = arith.constant 0 : index
    %28 = vector.load %arg4[%c0_18, %c0_19, %c0_20] : memref<7x16x1xf32, #tpu.memory_space<vmem>>, vector<1x16x1xf32>
    %29 = vector.shape_cast %28 : vector<1x16x1xf32> to vector<16x1xf32>
    %30 = vector.broadcast %29 : vector<16x1xf32> to vector<16x128xf32>
    %31 = arith.addf %27, %30 : vector<16x128xf32>
    %cst_21 = arith.constant 0.000000e+00 : f32
    %32 = vector.broadcast %cst_21 : f32 to vector<16x128xf32>
    %33 = arith.maximumf %31, %32 : vector<16x128xf32>
    %c0_22 = arith.constant 0 : index
    %c0_23 = arith.constant 0 : index
    %c0_24 = arith.constant 0 : index
    %34 = vector.load %arg5[%c0_22, %c0_23, %c0_24] : memref<7x16x1xf32, #tpu.memory_space<vmem>>, vector<1x16x1xf32>
    %35 = vector.shape_cast %34 : vector<1x16x1xf32> to vector<16x1xf32>
    %36 = vector.broadcast %35 : vector<16x1xf32> to vector<16x128xf32>
    %37 = arith.mulf %33, %36 : vector<16x128xf32>
    %c0_25 = arith.constant 0 : index
    %c0_26 = arith.constant 0 : index
    %c0_27 = arith.constant 0 : index
    %38 = vector.load %arg6[%c0_25, %c0_26, %c0_27] : memref<7x16x1xf32, #tpu.memory_space<vmem>>, vector<1x16x1xf32>
    %39 = vector.shape_cast %38 : vector<1x16x1xf32> to vector<16x1xf32>
    %40 = vector.broadcast %39 : vector<16x1xf32> to vector<16x128xf32>
    %41 = arith.addf %37, %40 : vector<16x128xf32>
    %42 = vector.extract_strided_slice %41 {offsets = [0, 0], sizes = [8, 128], strides = [1, 1]} : vector<16x128xf32> to vector<8x128xf32>
    %43 = vector.extract_strided_slice %41 {offsets = [8, 0], sizes = [8, 128], strides = [1, 1]} : vector<16x128xf32> to vector<8x128xf32>
    %44 = arith.addf %42, %43 : vector<8x128xf32>
    %cst_28 = arith.constant 0.000000e+00 : f32
    %45 = vector.broadcast %cst_28 : f32 to vector<8x128xf32>
    %46 = arith.maximumf %44, %45 : vector<8x128xf32>
    %47 = vector.extract_strided_slice %5 {offsets = [8, 0], sizes = [8, 1], strides = [1, 1]} : vector<64x1xf32> to vector<8x1xf32>
    %48 = vector.broadcast %47 : vector<8x1xf32> to vector<8x128xf32>
    %49 = arith.mulf %46, %48 : vector<8x128xf32>
    %50 = vector.extract_strided_slice %6 {offsets = [8, 0], sizes = [8, 1], strides = [1, 1]} : vector<64x1xf32> to vector<8x1xf32>
    %51 = vector.broadcast %50 : vector<8x1xf32> to vector<8x128xf32>
    %52 = arith.addf %49, %51 : vector<8x128xf32>
    %c0_29 = arith.constant 0 : index
    %c8 = arith.constant 8 : index
    %c0_30 = arith.constant 0 : index
    %53 = vector.load %arg9[%c0_29, %c8, %c0_30] : memref<1x64x128xf32, #tpu.memory_space<vmem>>, vector<1x8x128xf32>
    %54 = vector.shape_cast %53 : vector<1x8x128xf32> to vector<8x128xf32>
    %55 = vector.shape_cast %52 : vector<8x128xf32> to vector<1x8x128xf32>
    tpu.vector_store %arg9[%c0_29, %c8, %c0_30], %55 {strides = array<i32>} : memref<1x64x128xf32, #tpu.memory_space<vmem>>, vector<1x8x128xf32>,
    %56 = vector.extract_strided_slice %3 {offsets = [16, 0], sizes = [8, 132], strides = [1, 1]} : vector<64x132xf32> to vector<8x132xf32>
    %57 = vector.extract_strided_slice %56 {offsets = [0, 2], sizes = [8, 128], strides = [1, 1]} : vector<8x132xf32> to vector<8x128xf32>
    %58 = arith.addf %57, %44 : vector<8x128xf32>
    %59 = arith.mulf %58, %4 : vector<8x128xf32>
    %c0_31 = arith.constant 0 : index
    %c2 = arith.constant 2 : index
    %60 = vector.load %arg10[%c0_31, %c2] : memref<8x132xf32, #tpu.memory_space<vmem>>, vector<8x128xf32>
    tpu.vector_store %arg10[%c0_31, %c2], %59 {strides = array<i32>} : memref<8x132xf32, #tpu.memory_space<vmem>>, vector<8x128xf32>,
    %c0_32 = arith.constant 0 : index
    %c0_33 = arith.constant 0 : index
    %61 = vector.load %arg10[%c0_32, %c0_33] : memref<8x132xf32, #tpu.memory_space<vmem>>, vector<8x132xf32>
    %62 = vector.extract_strided_slice %61 {offsets = [0, 0], sizes = [8, 128], strides = [1, 1]} : vector<8x132xf32> to vector<8x128xf32>
    %63 = vector.extract_strided_slice %61 {offsets = [0, 2], sizes = [8, 128], strides = [1, 1]} : vector<8x132xf32> to vector<8x128xf32>
    %64 = vector.extract_strided_slice %61 {offsets = [0, 4], sizes = [8, 128], strides = [1, 1]} : vector<8x132xf32> to vector<8x128xf32>
    %65 = vector.extract_strided_slice %61 {offsets = [0, 2], sizes = [8, 128], strides = [1, 1]} : vector<8x132xf32> to vector<8x128xf32>
    %66 = tpu.concatenate %62, %63, %64, %65 in 0 : vector<8x128xf32>, vector<8x128xf32>, vector<8x128xf32>, vector<8x128xf32> -> vector<32x128xf32>
    %c1 = arith.constant 1 : index
    %c0_34 = arith.constant 0 : index
    %c0_35 = arith.constant 0 : index
    %67 = vector.load %arg3[%c1, %c0_34, %c0_35] : memref<7x16x32xf32, #tpu.memory_space<vmem>>, vector<1x16x32xf32>
    %68 = vector.shape_cast %67 : vector<1x16x32xf32> to vector<16x32xf32>
    %cst_36 = arith.constant dense<0.000000e+00> : vector<16x128xf32>
    %69 = tpu.matmul %68, %66, %cst_36 {dimension_numbers = #tpu.dot_dimension_numbers<[1], [0], [0], [1], [0, 0, 1, 1], [], []>} : vector<16x32xf32>, vector<32x128xf32>, vector<16x128xf32> -> vector<16x128xf32>
    %c1_37 = arith.constant 1 : index
    %c0_38 = arith.constant 0 : index
    %c0_39 = arith.constant 0 : index
    %70 = vector.load %arg4[%c1_37, %c0_38, %c0_39] : memref<7x16x1xf32, #tpu.memory_space<vmem>>, vector<1x16x1xf32>
    %71 = vector.shape_cast %70 : vector<1x16x1xf32> to vector<16x1xf32>
    %72 = vector.broadcast %71 : vector<16x1xf32> to vector<16x128xf32>
    %73 = arith.addf %69, %72 : vector<16x128xf32>
    %cst_40 = arith.constant 0.000000e+00 : f32
    %74 = vector.broadcast %cst_40 : f32 to vector<16x128xf32>
    %75 = arith.maximumf %73, %74 : vector<16x128xf32>
    %c1_41 = arith.constant 1 : index
    %c0_42 = arith.constant 0 : index
    %c0_43 = arith.constant 0 : index
    %76 = vector.load %arg5[%c1_41, %c0_42, %c0_43] : memref<7x16x1xf32, #tpu.memory_space<vmem>>, vector<1x16x1xf32>
    %77 = vector.shape_cast %76 : vector<1x16x1xf32> to vector<16x1xf32>
    %78 = vector.broadcast %77 : vector<16x1xf32> to vector<16x128xf32>
    %79 = arith.mulf %75, %78 : vector<16x128xf32>
    %c1_44 = arith.constant 1 : index
    %c0_45 = arith.constant 0 : index
    %c0_46 = arith.constant 0 : index
    %80 = vector.load %arg6[%c1_44, %c0_45, %c0_46] : memref<7x16x1xf32, #tpu.memory_space<vmem>>, vector<1x16x1xf32>
    %81 = vector.shape_cast %80 : vector<1x16x1xf32> to vector<16x1xf32>
    %82 = vector.broadcast %81 : vector<16x1xf32> to vector<16x128xf32>
    %83 = arith.addf %79, %82 : vector<16x128xf32>
    %84 = vector.extract_strided_slice %83 {offsets = [0, 0], sizes = [8, 128], strides = [1, 1]} : vector<16x128xf32> to vector<8x128xf32>
    %85 = vector.extract_strided_slice %83 {offsets = [8, 0], sizes = [8, 128], strides = [1, 1]} : vector<16x128xf32> to vector<8x128xf32>
    %86 = arith.addf %84, %85 : vector<8x128xf32>
    %cst_47 = arith.constant 0.000000e+00 : f32
    %87 = vector.broadcast %cst_47 : f32 to vector<8x128xf32>
    %88 = arith.maximumf %86, %87 : vector<8x128xf32>
    %89 = vector.extract_strided_slice %5 {offsets = [16, 0], sizes = [8, 1], strides = [1, 1]} : vector<64x1xf32> to vector<8x1xf32>
    %90 = vector.broadcast %89 : vector<8x1xf32> to vector<8x128xf32>
    %91 = arith.mulf %88, %90 : vector<8x128xf32>
    %92 = vector.extract_strided_slice %6 {offsets = [16, 0], sizes = [8, 1], strides = [1, 1]} : vector<64x1xf32> to vector<8x1xf32>
    %93 = vector.broadcast %92 : vector<8x1xf32> to vector<8x128xf32>
    %94 = arith.addf %91, %93 : vector<8x128xf32>
    %c0_48 = arith.constant 0 : index
    %c16 = arith.constant 16 : index
    %c0_49 = arith.constant 0 : index
    %95 = vector.load %arg9[%c0_48, %c16, %c0_49] : memref<1x64x128xf32, #tpu.memory_space<vmem>>, vector<1x8x128xf32>
    %96 = vector.shape_cast %95 : vector<1x8x128xf32> to vector<8x128xf32>
    %97 = vector.shape_cast %94 : vector<8x128xf32> to vector<1x8x128xf32>
    tpu.vector_store %arg9[%c0_48, %c16, %c0_49], %97 {strides = array<i32>} : memref<1x64x128xf32, #tpu.memory_space<vmem>>, vector<1x8x128xf32>,
    %98 = vector.extract_strided_slice %3 {offsets = [24, 0], sizes = [8, 132], strides = [1, 1]} : vector<64x132xf32> to vector<8x132xf32>
    %99 = vector.extract_strided_slice %98 {offsets = [0, 2], sizes = [8, 128], strides = [1, 1]} : vector<8x132xf32> to vector<8x128xf32>
    %100 = arith.addf %99, %86 : vector<8x128xf32>
    %101 = arith.mulf %100, %4 : vector<8x128xf32>
    %c0_50 = arith.constant 0 : index
    %c2_51 = arith.constant 2 : index
    %102 = vector.load %arg10[%c0_50, %c2_51] : memref<8x132xf32, #tpu.memory_space<vmem>>, vector<8x128xf32>
    tpu.vector_store %arg10[%c0_50, %c2_51], %101 {strides = array<i32>} : memref<8x132xf32, #tpu.memory_space<vmem>>, vector<8x128xf32>,
    %c0_52 = arith.constant 0 : index
    %c0_53 = arith.constant 0 : index
    %103 = vector.load %arg10[%c0_52, %c0_53] : memref<8x132xf32, #tpu.memory_space<vmem>>, vector<8x132xf32>
    %104 = vector.extract_strided_slice %103 {offsets = [0, 0], sizes = [8, 128], strides = [1, 1]} : vector<8x132xf32> to vector<8x128xf32>
    %105 = vector.extract_strided_slice %103 {offsets = [0, 2], sizes = [8, 128], strides = [1, 1]} : vector<8x132xf32> to vector<8x128xf32>
    %106 = vector.extract_strided_slice %103 {offsets = [0, 4], sizes = [8, 128], strides = [1, 1]} : vector<8x132xf32> to vector<8x128xf32>
    %107 = vector.extract_strided_slice %103 {offsets = [0, 2], sizes = [8, 128], strides = [1, 1]} : vector<8x132xf32> to vector<8x128xf32>
    %108 = tpu.concatenate %104, %105, %106, %107 in 0 : vector<8x128xf32>, vector<8x128xf32>, vector<8x128xf32>, vector<8x128xf32> -> vector<32x128xf32>
    %c2_54 = arith.constant 2 : index
    %c0_55 = arith.constant 0 : index
    %c0_56 = arith.constant 0 : index
    %109 = vector.load %arg3[%c2_54, %c0_55, %c0_56] : memref<7x16x32xf32, #tpu.memory_space<vmem>>, vector<1x16x32xf32>
    %110 = vector.shape_cast %109 : vector<1x16x32xf32> to vector<16x32xf32>
    %cst_57 = arith.constant dense<0.000000e+00> : vector<16x128xf32>
    %111 = tpu.matmul %110, %108, %cst_57 {dimension_numbers = #tpu.dot_dimension_numbers<[1], [0], [0], [1], [0, 0, 1, 1], [], []>} : vector<16x32xf32>, vector<32x128xf32>, vector<16x128xf32> -> vector<16x128xf32>
    %c2_58 = arith.constant 2 : index
    %c0_59 = arith.constant 0 : index
    %c0_60 = arith.constant 0 : index
    %112 = vector.load %arg4[%c2_58, %c0_59, %c0_60] : memref<7x16x1xf32, #tpu.memory_space<vmem>>, vector<1x16x1xf32>
    %113 = vector.shape_cast %112 : vector<1x16x1xf32> to vector<16x1xf32>
    %114 = vector.broadcast %113 : vector<16x1xf32> to vector<16x128xf32>
    %115 = arith.addf %111, %114 : vector<16x128xf32>
    %cst_61 = arith.constant 0.000000e+00 : f32
    %116 = vector.broadcast %cst_61 : f32 to vector<16x128xf32>
    %117 = arith.maximumf %115, %116 : vector<16x128xf32>
    %c2_62 = arith.constant 2 : index
    %c0_63 = arith.constant 0 : index
    %c0_64 = arith.constant 0 : index
    %118 = vector.load %arg5[%c2_62, %c0_63, %c0_64] : memref<7x16x1xf32, #tpu.memory_space<vmem>>, vector<1x16x1xf32>
    %119 = vector.shape_cast %118 : vector<1x16x1xf32> to vector<16x1xf32>
    %120 = vector.broadcast %119 : vector<16x1xf32> to vector<16x128xf32>
    %121 = arith.mulf %117, %120 : vector<16x128xf32>
    %c2_65 = arith.constant 2 : index
    %c0_66 = arith.constant 0 : index
    %c0_67 = arith.constant 0 : index
    %122 = vector.load %arg6[%c2_65, %c0_66, %c0_67] : memref<7x16x1xf32, #tpu.memory_space<vmem>>, vector<1x16x1xf32>
    %123 = vector.shape_cast %122 : vector<1x16x1xf32> to vector<16x1xf32>
    %124 = vector.broadcast %123 : vector<16x1xf32> to vector<16x128xf32>
    %125 = arith.addf %121, %124 : vector<16x128xf32>
    %126 = vector.extract_strided_slice %125 {offsets = [0, 0], sizes = [8, 128], strides = [1, 1]} : vector<16x128xf32> to vector<8x128xf32>
    %127 = vector.extract_strided_slice %125 {offsets = [8, 0], sizes = [8, 128], strides = [1, 1]} : vector<16x128xf32> to vector<8x128xf32>
    %128 = arith.addf %126, %127 : vector<8x128xf32>
    %cst_68 = arith.constant 0.000000e+00 : f32
    %129 = vector.broadcast %cst_68 : f32 to vector<8x128xf32>
    %130 = arith.maximumf %128, %129 : vector<8x128xf32>
    %131 = vector.extract_strided_slice %5 {offsets = [24, 0], sizes = [8, 1], strides = [1, 1]} : vector<64x1xf32> to vector<8x1xf32>
    %132 = vector.broadcast %131 : vector<8x1xf32> to vector<8x128xf32>
    %133 = arith.mulf %130, %132 : vector<8x128xf32>
    %134 = vector.extract_strided_slice %6 {offsets = [24, 0], sizes = [8, 1], strides = [1, 1]} : vector<64x1xf32> to vector<8x1xf32>
    %135 = vector.broadcast %134 : vector<8x1xf32> to vector<8x128xf32>
    %136 = arith.addf %133, %135 : vector<8x128xf32>
    %c0_69 = arith.constant 0 : index
    %c24 = arith.constant 24 : index
    %c0_70 = arith.constant 0 : index
    %137 = vector.load %arg9[%c0_69, %c24, %c0_70] : memref<1x64x128xf32, #tpu.memory_space<vmem>>, vector<1x8x128xf32>
    %138 = vector.shape_cast %137 : vector<1x8x128xf32> to vector<8x128xf32>
    %139 = vector.shape_cast %136 : vector<8x128xf32> to vector<1x8x128xf32>
    tpu.vector_store %arg9[%c0_69, %c24, %c0_70], %139 {strides = array<i32>} : memref<1x64x128xf32, #tpu.memory_space<vmem>>, vector<1x8x128xf32>,
    %140 = vector.extract_strided_slice %3 {offsets = [32, 0], sizes = [8, 132], strides = [1, 1]} : vector<64x132xf32> to vector<8x132xf32>
    %141 = vector.extract_strided_slice %140 {offsets = [0, 2], sizes = [8, 128], strides = [1, 1]} : vector<8x132xf32> to vector<8x128xf32>
    %142 = arith.addf %141, %128 : vector<8x128xf32>
    %143 = arith.mulf %142, %4 : vector<8x128xf32>
    %c0_71 = arith.constant 0 : index
    %c2_72 = arith.constant 2 : index
    %144 = vector.load %arg10[%c0_71, %c2_72] : memref<8x132xf32, #tpu.memory_space<vmem>>, vector<8x128xf32>
    tpu.vector_store %arg10[%c0_71, %c2_72], %143 {strides = array<i32>} : memref<8x132xf32, #tpu.memory_space<vmem>>, vector<8x128xf32>,
    %c0_73 = arith.constant 0 : index
    %c0_74 = arith.constant 0 : index
    %145 = vector.load %arg10[%c0_73, %c0_74] : memref<8x132xf32, #tpu.memory_space<vmem>>, vector<8x132xf32>
    %146 = vector.extract_strided_slice %145 {offsets = [0, 0], sizes = [8, 128], strides = [1, 1]} : vector<8x132xf32> to vector<8x128xf32>
    %147 = vector.extract_strided_slice %145 {offsets = [0, 2], sizes = [8, 128], strides = [1, 1]} : vector<8x132xf32> to vector<8x128xf32>
    %148 = vector.extract_strided_slice %145 {offsets = [0, 4], sizes = [8, 128], strides = [1, 1]} : vector<8x132xf32> to vector<8x128xf32>
    %149 = vector.extract_strided_slice %145 {offsets = [0, 2], sizes = [8, 128], strides = [1, 1]} : vector<8x132xf32> to vector<8x128xf32>
    %150 = tpu.concatenate %146, %147, %148, %149 in 0 : vector<8x128xf32>, vector<8x128xf32>, vector<8x128xf32>, vector<8x128xf32> -> vector<32x128xf32>
    %c3 = arith.constant 3 : index
    %c0_75 = arith.constant 0 : index
    %c0_76 = arith.constant 0 : index
    %151 = vector.load %arg3[%c3, %c0_75, %c0_76] : memref<7x16x32xf32, #tpu.memory_space<vmem>>, vector<1x16x32xf32>
    %152 = vector.shape_cast %151 : vector<1x16x32xf32> to vector<16x32xf32>
    %cst_77 = arith.constant dense<0.000000e+00> : vector<16x128xf32>
    %153 = tpu.matmul %152, %150, %cst_77 {dimension_numbers = #tpu.dot_dimension_numbers<[1], [0], [0], [1], [0, 0, 1, 1], [], []>} : vector<16x32xf32>, vector<32x128xf32>, vector<16x128xf32> -> vector<16x128xf32>
    %c3_78 = arith.constant 3 : index
    %c0_79 = arith.constant 0 : index
    %c0_80 = arith.constant 0 : index
    %154 = vector.load %arg4[%c3_78, %c0_79, %c0_80] : memref<7x16x1xf32, #tpu.memory_space<vmem>>, vector<1x16x1xf32>
    %155 = vector.shape_cast %154 : vector<1x16x1xf32> to vector<16x1xf32>
    %156 = vector.broadcast %155 : vector<16x1xf32> to vector<16x128xf32>
    %157 = arith.addf %153, %156 : vector<16x128xf32>
    %cst_81 = arith.constant 0.000000e+00 : f32
    %158 = vector.broadcast %cst_81 : f32 to vector<16x128xf32>
    %159 = arith.maximumf %157, %158 : vector<16x128xf32>
    %c3_82 = arith.constant 3 : index
    %c0_83 = arith.constant 0 : index
    %c0_84 = arith.constant 0 : index
    %160 = vector.load %arg5[%c3_82, %c0_83, %c0_84] : memref<7x16x1xf32, #tpu.memory_space<vmem>>, vector<1x16x1xf32>
    %161 = vector.shape_cast %160 : vector<1x16x1xf32> to vector<16x1xf32>
    %162 = vector.broadcast %161 : vector<16x1xf32> to vector<16x128xf32>
    %163 = arith.mulf %159, %162 : vector<16x128xf32>
    %c3_85 = arith.constant 3 : index
    %c0_86 = arith.constant 0 : index
    %c0_87 = arith.constant 0 : index
    %164 = vector.load %arg6[%c3_85, %c0_86, %c0_87] : memref<7x16x1xf32, #tpu.memory_space<vmem>>, vector<1x16x1xf32>
    %165 = vector.shape_cast %164 : vector<1x16x1xf32> to vector<16x1xf32>
    %166 = vector.broadcast %165 : vector<16x1xf32> to vector<16x128xf32>
    %167 = arith.addf %163, %166 : vector<16x128xf32>
    %168 = vector.extract_strided_slice %167 {offsets = [0, 0], sizes = [8, 128], strides = [1, 1]} : vector<16x128xf32> to vector<8x128xf32>
    %169 = vector.extract_strided_slice %167 {offsets = [8, 0], sizes = [8, 128], strides = [1, 1]} : vector<16x128xf32> to vector<8x128xf32>
    %170 = arith.addf %168, %169 : vector<8x128xf32>
    %cst_88 = arith.constant 0.000000e+00 : f32
    %171 = vector.broadcast %cst_88 : f32 to vector<8x128xf32>
    %172 = arith.maximumf %170, %171 : vector<8x128xf32>
    %173 = vector.extract_strided_slice %5 {offsets = [32, 0], sizes = [8, 1], strides = [1, 1]} : vector<64x1xf32> to vector<8x1xf32>
    %174 = vector.broadcast %173 : vector<8x1xf32> to vector<8x128xf32>
    %175 = arith.mulf %172, %174 : vector<8x128xf32>
    %176 = vector.extract_strided_slice %6 {offsets = [32, 0], sizes = [8, 1], strides = [1, 1]} : vector<64x1xf32> to vector<8x1xf32>
    %177 = vector.broadcast %176 : vector<8x1xf32> to vector<8x128xf32>
    %178 = arith.addf %175, %177 : vector<8x128xf32>
    %c0_89 = arith.constant 0 : index
    %c32 = arith.constant 32 : index
    %c0_90 = arith.constant 0 : index
    %179 = vector.load %arg9[%c0_89, %c32, %c0_90] : memref<1x64x128xf32, #tpu.memory_space<vmem>>, vector<1x8x128xf32>
    %180 = vector.shape_cast %179 : vector<1x8x128xf32> to vector<8x128xf32>
    %181 = vector.shape_cast %178 : vector<8x128xf32> to vector<1x8x128xf32>
    tpu.vector_store %arg9[%c0_89, %c32, %c0_90], %181 {strides = array<i32>} : memref<1x64x128xf32, #tpu.memory_space<vmem>>, vector<1x8x128xf32>,
    %182 = vector.extract_strided_slice %3 {offsets = [40, 0], sizes = [8, 132], strides = [1, 1]} : vector<64x132xf32> to vector<8x132xf32>
    %183 = vector.extract_strided_slice %182 {offsets = [0, 2], sizes = [8, 128], strides = [1, 1]} : vector<8x132xf32> to vector<8x128xf32>
    %184 = arith.addf %183, %170 : vector<8x128xf32>
    %185 = arith.mulf %184, %4 : vector<8x128xf32>
    %c0_91 = arith.constant 0 : index
    %c2_92 = arith.constant 2 : index
    %186 = vector.load %arg10[%c0_91, %c2_92] : memref<8x132xf32, #tpu.memory_space<vmem>>, vector<8x128xf32>
    tpu.vector_store %arg10[%c0_91, %c2_92], %185 {strides = array<i32>} : memref<8x132xf32, #tpu.memory_space<vmem>>, vector<8x128xf32>,
    %c0_93 = arith.constant 0 : index
    %c0_94 = arith.constant 0 : index
    %187 = vector.load %arg10[%c0_93, %c0_94] : memref<8x132xf32, #tpu.memory_space<vmem>>, vector<8x132xf32>
    %188 = vector.extract_strided_slice %187 {offsets = [0, 0], sizes = [8, 128], strides = [1, 1]} : vector<8x132xf32> to vector<8x128xf32>
    %189 = vector.extract_strided_slice %187 {offsets = [0, 2], sizes = [8, 128], strides = [1, 1]} : vector<8x132xf32> to vector<8x128xf32>
    %190 = vector.extract_strided_slice %187 {offsets = [0, 4], sizes = [8, 128], strides = [1, 1]} : vector<8x132xf32> to vector<8x128xf32>
    %191 = vector.extract_strided_slice %187 {offsets = [0, 2], sizes = [8, 128], strides = [1, 1]} : vector<8x132xf32> to vector<8x128xf32>
    %192 = tpu.concatenate %188, %189, %190, %191 in 0 : vector<8x128xf32>, vector<8x128xf32>, vector<8x128xf32>, vector<8x128xf32> -> vector<32x128xf32>
    %c4 = arith.constant 4 : index
    %c0_95 = arith.constant 0 : index
    %c0_96 = arith.constant 0 : index
    %193 = vector.load %arg3[%c4, %c0_95, %c0_96] : memref<7x16x32xf32, #tpu.memory_space<vmem>>, vector<1x16x32xf32>
    %194 = vector.shape_cast %193 : vector<1x16x32xf32> to vector<16x32xf32>
    %cst_97 = arith.constant dense<0.000000e+00> : vector<16x128xf32>
    %195 = tpu.matmul %194, %192, %cst_97 {dimension_numbers = #tpu.dot_dimension_numbers<[1], [0], [0], [1], [0, 0, 1, 1], [], []>} : vector<16x32xf32>, vector<32x128xf32>, vector<16x128xf32> -> vector<16x128xf32>
    %c4_98 = arith.constant 4 : index
    %c0_99 = arith.constant 0 : index
    %c0_100 = arith.constant 0 : index
    %196 = vector.load %arg4[%c4_98, %c0_99, %c0_100] : memref<7x16x1xf32, #tpu.memory_space<vmem>>, vector<1x16x1xf32>
    %197 = vector.shape_cast %196 : vector<1x16x1xf32> to vector<16x1xf32>
    %198 = vector.broadcast %197 : vector<16x1xf32> to vector<16x128xf32>
    %199 = arith.addf %195, %198 : vector<16x128xf32>
    %cst_101 = arith.constant 0.000000e+00 : f32
    %200 = vector.broadcast %cst_101 : f32 to vector<16x128xf32>
    %201 = arith.maximumf %199, %200 : vector<16x128xf32>
    %c4_102 = arith.constant 4 : index
    %c0_103 = arith.constant 0 : index
    %c0_104 = arith.constant 0 : index
    %202 = vector.load %arg5[%c4_102, %c0_103, %c0_104] : memref<7x16x1xf32, #tpu.memory_space<vmem>>, vector<1x16x1xf32>
    %203 = vector.shape_cast %202 : vector<1x16x1xf32> to vector<16x1xf32>
    %204 = vector.broadcast %203 : vector<16x1xf32> to vector<16x128xf32>
    %205 = arith.mulf %201, %204 : vector<16x128xf32>
    %c4_105 = arith.constant 4 : index
    %c0_106 = arith.constant 0 : index
    %c0_107 = arith.constant 0 : index
    %206 = vector.load %arg6[%c4_105, %c0_106, %c0_107] : memref<7x16x1xf32, #tpu.memory_space<vmem>>, vector<1x16x1xf32>
    %207 = vector.shape_cast %206 : vector<1x16x1xf32> to vector<16x1xf32>
    %208 = vector.broadcast %207 : vector<16x1xf32> to vector<16x128xf32>
    %209 = arith.addf %205, %208 : vector<16x128xf32>
    %210 = vector.extract_strided_slice %209 {offsets = [0, 0], sizes = [8, 128], strides = [1, 1]} : vector<16x128xf32> to vector<8x128xf32>
    %211 = vector.extract_strided_slice %209 {offsets = [8, 0], sizes = [8, 128], strides = [1, 1]} : vector<16x128xf32> to vector<8x128xf32>
    %212 = arith.addf %210, %211 : vector<8x128xf32>
    %cst_108 = arith.constant 0.000000e+00 : f32
    %213 = vector.broadcast %cst_108 : f32 to vector<8x128xf32>
    %214 = arith.maximumf %212, %213 : vector<8x128xf32>
    %215 = vector.extract_strided_slice %5 {offsets = [40, 0], sizes = [8, 1], strides = [1, 1]} : vector<64x1xf32> to vector<8x1xf32>
    %216 = vector.broadcast %215 : vector<8x1xf32> to vector<8x128xf32>
    %217 = arith.mulf %214, %216 : vector<8x128xf32>
    %218 = vector.extract_strided_slice %6 {offsets = [40, 0], sizes = [8, 1], strides = [1, 1]} : vector<64x1xf32> to vector<8x1xf32>
    %219 = vector.broadcast %218 : vector<8x1xf32> to vector<8x128xf32>
    %220 = arith.addf %217, %219 : vector<8x128xf32>
    %c0_109 = arith.constant 0 : index
    %c40 = arith.constant 40 : index
    %c0_110 = arith.constant 0 : index
    %221 = vector.load %arg9[%c0_109, %c40, %c0_110] : memref<1x64x128xf32, #tpu.memory_space<vmem>>, vector<1x8x128xf32>
    %222 = vector.shape_cast %221 : vector<1x8x128xf32> to vector<8x128xf32>
    %223 = vector.shape_cast %220 : vector<8x128xf32> to vector<1x8x128xf32>
    tpu.vector_store %arg9[%c0_109, %c40, %c0_110], %223 {strides = array<i32>} : memref<1x64x128xf32, #tpu.memory_space<vmem>>, vector<1x8x128xf32>,
    %224 = vector.extract_strided_slice %3 {offsets = [48, 0], sizes = [8, 132], strides = [1, 1]} : vector<64x132xf32> to vector<8x132xf32>
    %225 = vector.extract_strided_slice %224 {offsets = [0, 2], sizes = [8, 128], strides = [1, 1]} : vector<8x132xf32> to vector<8x128xf32>
    %226 = arith.addf %225, %212 : vector<8x128xf32>
    %227 = arith.mulf %226, %4 : vector<8x128xf32>
    %c0_111 = arith.constant 0 : index
    %c2_112 = arith.constant 2 : index
    %228 = vector.load %arg10[%c0_111, %c2_112] : memref<8x132xf32, #tpu.memory_space<vmem>>, vector<8x128xf32>
    tpu.vector_store %arg10[%c0_111, %c2_112], %227 {strides = array<i32>} : memref<8x132xf32, #tpu.memory_space<vmem>>, vector<8x128xf32>,
    %c0_113 = arith.constant 0 : index
    %c0_114 = arith.constant 0 : index
    %229 = vector.load %arg10[%c0_113, %c0_114] : memref<8x132xf32, #tpu.memory_space<vmem>>, vector<8x132xf32>
    %230 = vector.extract_strided_slice %229 {offsets = [0, 0], sizes = [8, 128], strides = [1, 1]} : vector<8x132xf32> to vector<8x128xf32>
    %231 = vector.extract_strided_slice %229 {offsets = [0, 2], sizes = [8, 128], strides = [1, 1]} : vector<8x132xf32> to vector<8x128xf32>
    %232 = vector.extract_strided_slice %229 {offsets = [0, 4], sizes = [8, 128], strides = [1, 1]} : vector<8x132xf32> to vector<8x128xf32>
    %233 = vector.extract_strided_slice %229 {offsets = [0, 2], sizes = [8, 128], strides = [1, 1]} : vector<8x132xf32> to vector<8x128xf32>
    %234 = tpu.concatenate %230, %231, %232, %233 in 0 : vector<8x128xf32>, vector<8x128xf32>, vector<8x128xf32>, vector<8x128xf32> -> vector<32x128xf32>
    %c5 = arith.constant 5 : index
    %c0_115 = arith.constant 0 : index
    %c0_116 = arith.constant 0 : index
    %235 = vector.load %arg3[%c5, %c0_115, %c0_116] : memref<7x16x32xf32, #tpu.memory_space<vmem>>, vector<1x16x32xf32>
    %236 = vector.shape_cast %235 : vector<1x16x32xf32> to vector<16x32xf32>
    %cst_117 = arith.constant dense<0.000000e+00> : vector<16x128xf32>
    %237 = tpu.matmul %236, %234, %cst_117 {dimension_numbers = #tpu.dot_dimension_numbers<[1], [0], [0], [1], [0, 0, 1, 1], [], []>} : vector<16x32xf32>, vector<32x128xf32>, vector<16x128xf32> -> vector<16x128xf32>
    %c5_118 = arith.constant 5 : index
    %c0_119 = arith.constant 0 : index
    %c0_120 = arith.constant 0 : index
    %238 = vector.load %arg4[%c5_118, %c0_119, %c0_120] : memref<7x16x1xf32, #tpu.memory_space<vmem>>, vector<1x16x1xf32>
    %239 = vector.shape_cast %238 : vector<1x16x1xf32> to vector<16x1xf32>
    %240 = vector.broadcast %239 : vector<16x1xf32> to vector<16x128xf32>
    %241 = arith.addf %237, %240 : vector<16x128xf32>
    %cst_121 = arith.constant 0.000000e+00 : f32
    %242 = vector.broadcast %cst_121 : f32 to vector<16x128xf32>
    %243 = arith.maximumf %241, %242 : vector<16x128xf32>
    %c5_122 = arith.constant 5 : index
    %c0_123 = arith.constant 0 : index
    %c0_124 = arith.constant 0 : index
    %244 = vector.load %arg5[%c5_122, %c0_123, %c0_124] : memref<7x16x1xf32, #tpu.memory_space<vmem>>, vector<1x16x1xf32>
    %245 = vector.shape_cast %244 : vector<1x16x1xf32> to vector<16x1xf32>
    %246 = vector.broadcast %245 : vector<16x1xf32> to vector<16x128xf32>
    %247 = arith.mulf %243, %246 : vector<16x128xf32>
    %c5_125 = arith.constant 5 : index
    %c0_126 = arith.constant 0 : index
    %c0_127 = arith.constant 0 : index
    %248 = vector.load %arg6[%c5_125, %c0_126, %c0_127] : memref<7x16x1xf32, #tpu.memory_space<vmem>>, vector<1x16x1xf32>
    %249 = vector.shape_cast %248 : vector<1x16x1xf32> to vector<16x1xf32>
    %250 = vector.broadcast %249 : vector<16x1xf32> to vector<16x128xf32>
    %251 = arith.addf %247, %250 : vector<16x128xf32>
    %252 = vector.extract_strided_slice %251 {offsets = [0, 0], sizes = [8, 128], strides = [1, 1]} : vector<16x128xf32> to vector<8x128xf32>
    %253 = vector.extract_strided_slice %251 {offsets = [8, 0], sizes = [8, 128], strides = [1, 1]} : vector<16x128xf32> to vector<8x128xf32>
    %254 = arith.addf %252, %253 : vector<8x128xf32>
    %cst_128 = arith.constant 0.000000e+00 : f32
    %255 = vector.broadcast %cst_128 : f32 to vector<8x128xf32>
    %256 = arith.maximumf %254, %255 : vector<8x128xf32>
    %257 = vector.extract_strided_slice %5 {offsets = [48, 0], sizes = [8, 1], strides = [1, 1]} : vector<64x1xf32> to vector<8x1xf32>
    %258 = vector.broadcast %257 : vector<8x1xf32> to vector<8x128xf32>
    %259 = arith.mulf %256, %258 : vector<8x128xf32>
    %260 = vector.extract_strided_slice %6 {offsets = [48, 0], sizes = [8, 1], strides = [1, 1]} : vector<64x1xf32> to vector<8x1xf32>
    %261 = vector.broadcast %260 : vector<8x1xf32> to vector<8x128xf32>
    %262 = arith.addf %259, %261 : vector<8x128xf32>
    %c0_129 = arith.constant 0 : index
    %c48 = arith.constant 48 : index
    %c0_130 = arith.constant 0 : index
    %263 = vector.load %arg9[%c0_129, %c48, %c0_130] : memref<1x64x128xf32, #tpu.memory_space<vmem>>, vector<1x8x128xf32>
    %264 = vector.shape_cast %263 : vector<1x8x128xf32> to vector<8x128xf32>
    %265 = vector.shape_cast %262 : vector<8x128xf32> to vector<1x8x128xf32>
    tpu.vector_store %arg9[%c0_129, %c48, %c0_130], %265 {strides = array<i32>} : memref<1x64x128xf32, #tpu.memory_space<vmem>>, vector<1x8x128xf32>,
    %266 = vector.extract_strided_slice %3 {offsets = [56, 0], sizes = [8, 132], strides = [1, 1]} : vector<64x132xf32> to vector<8x132xf32>
    %267 = vector.extract_strided_slice %266 {offsets = [0, 2], sizes = [8, 128], strides = [1, 1]} : vector<8x132xf32> to vector<8x128xf32>
    %268 = arith.addf %267, %254 : vector<8x128xf32>
    %269 = arith.mulf %268, %4 : vector<8x128xf32>
    %c0_131 = arith.constant 0 : index
    %c2_132 = arith.constant 2 : index
    %270 = vector.load %arg10[%c0_131, %c2_132] : memref<8x132xf32, #tpu.memory_space<vmem>>, vector<8x128xf32>
    tpu.vector_store %arg10[%c0_131, %c2_132], %269 {strides = array<i32>} : memref<8x132xf32, #tpu.memory_space<vmem>>, vector<8x128xf32>,
    %c0_133 = arith.constant 0 : index
    %c0_134 = arith.constant 0 : index
    %271 = vector.load %arg10[%c0_133, %c0_134] : memref<8x132xf32, #tpu.memory_space<vmem>>, vector<8x132xf32>
    %272 = vector.extract_strided_slice %271 {offsets = [0, 0], sizes = [8, 128], strides = [1, 1]} : vector<8x132xf32> to vector<8x128xf32>
    %273 = vector.extract_strided_slice %271 {offsets = [0, 2], sizes = [8, 128], strides = [1, 1]} : vector<8x132xf32> to vector<8x128xf32>
    %274 = vector.extract_strided_slice %271 {offsets = [0, 4], sizes = [8, 128], strides = [1, 1]} : vector<8x132xf32> to vector<8x128xf32>
    %275 = vector.extract_strided_slice %271 {offsets = [0, 2], sizes = [8, 128], strides = [1, 1]} : vector<8x132xf32> to vector<8x128xf32>
    %276 = tpu.concatenate %272, %273, %274, %275 in 0 : vector<8x128xf32>, vector<8x128xf32>, vector<8x128xf32>, vector<8x128xf32> -> vector<32x128xf32>
    %c6 = arith.constant 6 : index
    %c0_135 = arith.constant 0 : index
    %c0_136 = arith.constant 0 : index
    %277 = vector.load %arg3[%c6, %c0_135, %c0_136] : memref<7x16x32xf32, #tpu.memory_space<vmem>>, vector<1x16x32xf32>
    %278 = vector.shape_cast %277 : vector<1x16x32xf32> to vector<16x32xf32>
    %cst_137 = arith.constant dense<0.000000e+00> : vector<16x128xf32>
    %279 = tpu.matmul %278, %276, %cst_137 {dimension_numbers = #tpu.dot_dimension_numbers<[1], [0], [0], [1], [0, 0, 1, 1], [], []>} : vector<16x32xf32>, vector<32x128xf32>, vector<16x128xf32> -> vector<16x128xf32>
    %c6_138 = arith.constant 6 : index
    %c0_139 = arith.constant 0 : index
    %c0_140 = arith.constant 0 : index
    %280 = vector.load %arg4[%c6_138, %c0_139, %c0_140] : memref<7x16x1xf32, #tpu.memory_space<vmem>>, vector<1x16x1xf32>
    %281 = vector.shape_cast %280 : vector<1x16x1xf32> to vector<16x1xf32>
    %282 = vector.broadcast %281 : vector<16x1xf32> to vector<16x128xf32>
    %283 = arith.addf %279, %282 : vector<16x128xf32>
    %cst_141 = arith.constant 0.000000e+00 : f32
    %284 = vector.broadcast %cst_141 : f32 to vector<16x128xf32>
    %285 = arith.maximumf %283, %284 : vector<16x128xf32>
    %c6_142 = arith.constant 6 : index
    %c0_143 = arith.constant 0 : index
    %c0_144 = arith.constant 0 : index
    %286 = vector.load %arg5[%c6_142, %c0_143, %c0_144] : memref<7x16x1xf32, #tpu.memory_space<vmem>>, vector<1x16x1xf32>
    %287 = vector.shape_cast %286 : vector<1x16x1xf32> to vector<16x1xf32>
    %288 = vector.broadcast %287 : vector<16x1xf32> to vector<16x128xf32>
    %289 = arith.mulf %285, %288 : vector<16x128xf32>
    %c6_145 = arith.constant 6 : index
    %c0_146 = arith.constant 0 : index
    %c0_147 = arith.constant 0 : index
    %290 = vector.load %arg6[%c6_145, %c0_146, %c0_147] : memref<7x16x1xf32, #tpu.memory_space<vmem>>, vector<1x16x1xf32>
    %291 = vector.shape_cast %290 : vector<1x16x1xf32> to vector<16x1xf32>
    %292 = vector.broadcast %291 : vector<16x1xf32> to vector<16x128xf32>
    %293 = arith.addf %289, %292 : vector<16x128xf32>
    %294 = vector.extract_strided_slice %293 {offsets = [0, 0], sizes = [8, 128], strides = [1, 1]} : vector<16x128xf32> to vector<8x128xf32>
    %295 = vector.extract_strided_slice %293 {offsets = [8, 0], sizes = [8, 128], strides = [1, 1]} : vector<16x128xf32> to vector<8x128xf32>
    %296 = arith.addf %294, %295 : vector<8x128xf32>
    %cst_148 = arith.constant 0.000000e+00 : f32
    %297 = vector.broadcast %cst_148 : f32 to vector<8x128xf32>
    %298 = arith.maximumf %296, %297 : vector<8x128xf32>
    %299 = vector.extract_strided_slice %5 {offsets = [56, 0], sizes = [8, 1], strides = [1, 1]} : vector<64x1xf32> to vector<8x1xf32>
    %300 = vector.broadcast %299 : vector<8x1xf32> to vector<8x128xf32>
    %301 = arith.mulf %298, %300 : vector<8x128xf32>
    %302 = vector.extract_strided_slice %6 {offsets = [56, 0], sizes = [8, 1], strides = [1, 1]} : vector<64x1xf32> to vector<8x1xf32>
    %303 = vector.broadcast %302 : vector<8x1xf32> to vector<8x128xf32>
    %304 = arith.addf %301, %303 : vector<8x128xf32>
    %c0_149 = arith.constant 0 : index
    %c56 = arith.constant 56 : index
    %c0_150 = arith.constant 0 : index
    %305 = vector.load %arg9[%c0_149, %c56, %c0_150] : memref<1x64x128xf32, #tpu.memory_space<vmem>>, vector<1x8x128xf32>
    %306 = vector.shape_cast %305 : vector<1x8x128xf32> to vector<8x128xf32>
    %307 = vector.shape_cast %304 : vector<8x128xf32> to vector<1x8x128xf32>
    tpu.vector_store %arg9[%c0_149, %c56, %c0_150], %307 {strides = array<i32>} : memref<1x64x128xf32, #tpu.memory_space<vmem>>, vector<1x8x128xf32>,
    return
  }
  func.func @transform_0(%arg0: i32) -> (i32, i32, i32) {
    %c0_i32 = arith.constant 0 : i32
    %c0_i32_0 = arith.constant 0 : i32
    %c0_i32_1 = arith.constant 0 : i32
    return %arg0, %c0_i32, %c0_i32_0 : i32, i32, i32
  }
  func.func @transform_1(%arg0: i32) -> (i32, i32) {
    %c0_i32 = arith.constant 0 : i32
    %c0_i32_0 = arith.constant 0 : i32
    %c0_i32_1 = arith.constant 0 : i32
    return %c0_i32, %c0_i32_0 : i32, i32
  }
  func.func @transform_2(%arg0: i32) -> (i32, i32, i32) {
    %c0_i32 = arith.constant 0 : i32
    %c0_i32_0 = arith.constant 0 : i32
    %c0_i32_1 = arith.constant 0 : i32
    %c0_i32_2 = arith.constant 0 : i32
    return %c0_i32, %c0_i32_0, %c0_i32_1 : i32, i32, i32
  }
  func.func @transform_3(%arg0: i32) -> (i32, i32, i32) {
    %c0_i32 = arith.constant 0 : i32
    %c0_i32_0 = arith.constant 0 : i32
    %c0_i32_1 = arith.constant 0 : i32
    %c0_i32_2 = arith.constant 0 : i32
    return %c0_i32, %c0_i32_0, %c0_i32_1 : i32, i32, i32
  }
  func.func @transform_4(%arg0: i32) -> (i32, i32, i32) {
    %c0_i32 = arith.constant 0 : i32
    %c0_i32_0 = arith.constant 0 : i32
    %c0_i32_1 = arith.constant 0 : i32
    %c0_i32_2 = arith.constant 0 : i32
    return %c0_i32, %c0_i32_0, %c0_i32_1 : i32, i32, i32
  }
  func.func @transform_5(%arg0: i32) -> (i32, i32, i32) {
    %c0_i32 = arith.constant 0 : i32
    %c0_i32_0 = arith.constant 0 : i32
    %c0_i32_1 = arith.constant 0 : i32
    %c0_i32_2 = arith.constant 0 : i32
    return %c0_i32, %c0_i32_0, %c0_i32_1 : i32, i32, i32
  }
  func.func @transform_6(%arg0: i32) -> (i32, i32) {
    %c0_i32 = arith.constant 0 : i32
    %c0_i32_0 = arith.constant 0 : i32
    %c0_i32_1 = arith.constant 0 : i32
    return %c0_i32, %c0_i32_0 : i32, i32
  }
  func.func @transform_7(%arg0: i32) -> (i32, i32) {
    %c0_i32 = arith.constant 0 : i32
    %c0_i32_0 = arith.constant 0 : i32
    %c0_i32_1 = arith.constant 0 : i32
    return %c0_i32, %c0_i32_0 : i32, i32
  }
  func.func @transform_8(%arg0: i32) -> (i32, i32, i32) {
    %c0_i32 = arith.constant 0 : i32
    %c0_i32_0 = arith.constant 0 : i32
    %c0_i32_1 = arith.constant 0 : i32
    return %arg0, %c0_i32, %c0_i32_0 : i32, i32, i32
  }
}

</mosaic_0001>

<llo_original>
// kernel: tpu_custom_call.1
$region0: #{tpu_custom_call.1}
  #allocation0 [shape = 'u32[]', space=smem, size = 0x4, offset = 0x4, fixed_abs, tag = 'smem constant byte address 0x4 - core index']
  #allocation1 [shape = 'u32[72,128]{1,0:T(1,128)}', space=vmem, size = 0x9000, scoped, tag = 'internal scratch']
  #allocation2 [shape = 'f32[8,132]{1,0:T(8,128)}', space=vmem, size = 0x2000, scoped, tag = 'scratch operand']
  %s0 = inlined_call_operand.vmem [shape: f32[1,64,132], index: 0, kind: input, shape index: {}]
  %s1 = inlined_call_operand.vmem [shape: f32[8,128], index: 1, kind: input, shape index: {}]
  %s2 = inlined_call_operand.vmem [shape: f32[7,16,32], index: 2, kind: input, shape index: {}]
  %s3 = inlined_call_operand.vmem [shape: f32[7,16,1], index: 3, kind: input, shape index: {}]
  %s4 = inlined_call_operand.vmem [shape: f32[7,16,1], index: 4, kind: input, shape index: {}]
  %s5 = inlined_call_operand.vmem [shape: f32[7,16,1], index: 5, kind: input, shape index: {}]
  %s6 = inlined_call_operand.vmem [shape: f32[64,1], index: 6, kind: input, shape index: {}]
  %s7 = inlined_call_operand.vmem [shape: f32[64,1], index: 7, kind: input, shape index: {}]
  %s8 = inlined_call_operand.hbm [shape: f32[1,64,128], index: 8, kind: output, shape index: {}]
  %s9 = sld [smem:[#allocation0]]
  $region42: #{tpu_custom_call.1} parent=0
    _
  %s11 = ssub.s32 1, %s9
  %s12 = scalar_select 0, %s11, %s9
  $region1: #{tpu_custom_call.1} parent=0
    #allocation3 [shape = 'u8[32768]{0}', space=vmem, size = 0x8000, scoped, tag = 'output window, operand 0, single buffered']
    #allocation4 [shape = 's32[1]{0}', space=sflag, size = 0x4, scoped, tag = 'scoped memory for tpu_custom_call.1']
    %13 = vsyncpa [#allocation4], 0
    // Predicated region
    $region2: #{tpu_custom_call.1} parent=1 // pred_check
      _
    $region3: #{tpu_custom_call.1} parent=1 // pred_check_branch
      %15 = sbr.rel (0) target = $region5
    $region4: #{tpu_custom_call.1} parent=1 // pred_region
      _
    $region5: #{tpu_custom_call.1} parent=1 // pred_fallthru
      _
    // Predicated region
    $region6: #{tpu_custom_call.1} parent=1 // pred_check
      _
    $region7: #{tpu_custom_call.1} parent=1 // pred_check_branch
      %17 = sbr.rel (0) target = $region9
    $region8: #{tpu_custom_call.1} parent=1 // pred_region
      _
    $region9: #{tpu_custom_call.1} parent=1 // pred_fallthru
      _
    // Predicated region
    $region10: #{tpu_custom_call.1} parent=1 // pred_check
      _
    $region11: #{tpu_custom_call.1} parent=1 // pred_check_branch
      %19 = sbr.rel (0) target = $region13
    $region12: #{tpu_custom_call.1} parent=1 // pred_region
      _
    $region13: #{tpu_custom_call.1} parent=1 // pred_fallthru
      _
    // Predicated region
    $region14: #{tpu_custom_call.1} parent=1 // pred_check
      _
    $region15: #{tpu_custom_call.1} parent=1 // pred_check_branch
      %21 = sbr.rel (0) target = $region17
    $region16: #{tpu_custom_call.1} parent=1 // pred_region
      _
    $region17: #{tpu_custom_call.1} parent=1 // pred_fallthru
      _
    // Predicated region
    $region18: #{tpu_custom_call.1} parent=1 // pred_check
      _
    $region19: #{tpu_custom_call.1} parent=1 // pred_check_branch
      %23 = sbr.rel (0) target = $region21
    $region20: #{tpu_custom_call.1} parent=1 // pred_region
      _
    $region21: #{tpu_custom_call.1} parent=1 // pred_fallthru
      _
    // Predicated region
    $region22: #{tpu_custom_call.1} parent=1 // pred_check
      _
    $region23: #{tpu_custom_call.1} parent=1 // pred_check_branch
      %25 = sbr.rel (0) target = $region25
    $region24: #{tpu_custom_call.1} parent=1 // pred_region
      _
    $region25: #{tpu_custom_call.1} parent=1 // pred_fallthru
      _
    // Predicated region
    $region26: #{tpu_custom_call.1} parent=1 // pred_check
      _
    $region27: #{tpu_custom_call.1} parent=1 // pred_check_branch
      %27 = sbr.rel (0) target = $region29
    $region28: #{tpu_custom_call.1} parent=1 // pred_region
      _
    $region29: #{tpu_custom_call.1} parent=1 // pred_fallthru
      _
    // Predicated region
    $region30: #{tpu_custom_call.1} parent=1 // pred_check
      _
    $region31: #{tpu_custom_call.1} parent=1 // pred_check_branch
      %29 = sbr.rel (0) target = $region33
    $region32: #{tpu_custom_call.1} parent=1 // pred_region
      _
    $region33: #{tpu_custom_call.1} parent=1 // pred_fallthru
      _
    %30 = vst [vmem:[#allocation2] sm:$0xff] 0.0
    %vm31 = vcmask 31744
    %32 = vst.msk [vmem:[#allocation2 + $0x8] sm:$0xff] %vm31, 0.0
    %v33 = vld [vmem:[%s0] sm:$0xff]
    %v34 = vld [vmem:[%s0 + $0x8] sm:$0xff]
    %v35 = vld [vmem:[%s0 + $0x10] sm:$0xff]
    %v36 = vld [vmem:[%s0 + $0x18] sm:$0xff]
    %v37 = vld [vmem:[%s0 + $0x20] sm:$0xff]
    %v38 = vld [vmem:[%s0 + $0x28] sm:$0xff]
    %v39 = vld [vmem:[%s0 + $0x30] sm:$0xff]
    %v40 = vld [vmem:[%s0 + $0x38] sm:$0xff]
    %v41 = vld [vmem:[%s0 + $0x40] sm:$0xff]
    %v42 = vld [vmem:[%s0 + $0x48] sm:$0xff]
    %v43 = vld [vmem:[%s0 + $0x50] sm:$0xff]
    %v44 = vld [vmem:[%s0 + $0x58] sm:$0xff]
    %v45 = vld [vmem:[%s0 + $0x60] sm:$0xff]
    %v46 = vld [vmem:[%s0 + $0x68] sm:$0xff]
    %v47 = vld [vmem:[%s0 + $0x70] sm:$0xff]
    %v48 = vld [vmem:[%s0 + $0x78] sm:$0xff]
    %v49 = vld [vmem:[%s1] sm:$0xff]
    %v50 = vld [vmem:[%s6] sm:$0xff]
    %v51 = vld [vmem:[%s6 + $0x8] sm:$0xff]
    %v52 = vld [vmem:[%s6 + $0x10] sm:$0xff]
    %v53 = vld [vmem:[%s6 + $0x18] sm:$0xff]
    %v54 = vld [vmem:[%s6 + $0x20] sm:$0xff]
    %v55 = vld [vmem:[%s6 + $0x28] sm:$0xff]
    %v56 = vld [vmem:[%s6 + $0x30] sm:$0xff]
    %v57 = vld [vmem:[%s6 + $0x38] sm:$0xff]
    %v58 = vld [vmem:[%s7] sm:$0xff]
    %v59 = vld [vmem:[%s7 + $0x8] sm:$0xff]
    %v60 = vld [vmem:[%s7 + $0x10] sm:$0xff]
    %v61 = vld [vmem:[%s7 + $0x18] sm:$0xff]
    %v62 = vld [vmem:[%s7 + $0x20] sm:$0xff]
    %v63 = vld [vmem:[%s7 + $0x28] sm:$0xff]
    %v64 = vld [vmem:[%s7 + $0x30] sm:$0xff]
    %v65 = vld [vmem:[%s7 + $0x38] sm:$0xff]
    %v66 = vmax.f32 %v33, 0.0
    %v67 = vmax.f32 %v34, 0.0
    %69 = vset.pattern.permute.xlu0 0
    %70 = vperm.xlu0 %69, %v50
    %v71 = vpop.permute.xlu0 %70
    %v73 = vmul.f32 %v66, %v71
    %v74 = vmul.f32 %v67, %v71
    %76 = vset.pattern.permute.xlu0 0
    %77 = vperm.xlu0 %76, %v58
    %v78 = vpop.permute.xlu0 %77
    %v80 = vadd.f32 %v73, %v78
    %v81 = vadd.f32 %v74, %v78
    %84 = vrot.lane.b32.xlu0 %v80, 126
    %v85 = vpop.permute.xlu0 %84
    %86 = vrot.lane.b32.xlu0 %v81, 126
    %v87 = vpop.permute.xlu0 %86
    %vm88 = vcmask 1031168
    %v89 = vsel %vm88, %v85, %v87
    %91 = vst [vmem:[#allocation3] sm:$0xff] %v89
    %94 = vrot.lane.b32.xlu0 %v35, 126
    %v95 = vpop.permute.xlu0 %94
    %96 = vrot.lane.b32.xlu0 %v36, 126
    %v97 = vpop.permute.xlu0 %96
    %v98 = vsel %vm88, %v95, %v97
    %100 = vrot.lane.b32.xlu0 %v35, 124
    %v101 = vpop.permute.xlu0 %100
    %102 = vrot.lane.b32.xlu0 %v36, 124
    %v103 = vpop.permute.xlu0 %102
    %vm104 = vcmask 1014784
    %v105 = vsel %vm104, %v101, %v103
    %v107 = vld [vmem:[%s2] sm:$0xff]
    %v108 = vld [vmem:[%s2 + $0x8] sm:$0xff]
    %v109 = vld [vmem:[%s3] sm:$0xff]
    %v110 = vld [vmem:[%s3 + $0x8] sm:$0xff]
    %112 = vset.pattern.permute.xlu0 0
    %113 = vperm.xlu0 %112, %v109
    %v114 = vpop.permute.xlu0 %113
    %117 = vset.pattern.permute.xlu0 0
    %118 = vperm.xlu0 %117, %v110
    %v119 = vpop.permute.xlu0 %118
    %vm121 = vcmask 261120
    %v123 = vsel %vm121, %v107, 0
    %v126 = vsel %vm121, %v108, 0
    %128 = vmatpush.msra.mxu0 0.0
    %129 = vmatpush.msra.mxu0 0.0
    %130 = vmatpush.msra.mxu0 0.0
    %131 = vmatpush.msra.mxu0 0.0
    %132 = vmatpush.msra.mxu0 0.0
    %133 = vmatpush.msra.mxu0 0.0
    %134 = vmatpush.msra.mxu0 0.0
    %135 = vmatpush.msra.mxu0 0.0
    %136 = vmatpush.msra.mxu0 0.0
    %137 = vmatpush.msra.mxu0 0.0
    %138 = vmatpush.msra.mxu0 0.0
    %139 = vmatpush.msra.mxu0 0.0
    %140 = vmatpush.msra.mxu0 %v98
    %141 = vmatpush.msra.mxu0 %v105
    %142 = vmatpush.msra.mxu0 %v98
    %143 = vmatpush.msra.mxu0 %v35
    %144 = vmatmul.f32.gmra.mxu0 %v123
    %v145 = vpop.f32.mrf.mxu0
    %v146 = vadd.f32 %v114, %v145
    %147 = vmatmul.f32.gmra.mxu0 %v126
    %v148 = vpop.f32.mrf.mxu0
    %v149 = vadd.f32 %v119, %v148
    %150 = vdwg.mxu0
    %v151 = vmax.f32 %v146, 0.0
    %v152 = vmax.f32 %v149, 0.0
    %v153 = vld [vmem:[%s4] sm:$0xff]
    %v154 = vld [vmem:[%s4 + $0x8] sm:$0xff]
    %156 = vset.pattern.permute.xlu0 0
    %157 = vperm.xlu0 %156, %v153
    %v158 = vpop.permute.xlu0 %157
    %161 = vset.pattern.permute.xlu0 0
    %162 = vperm.xlu0 %161, %v154
    %v163 = vpop.permute.xlu0 %162
    %v165 = vmul.f32 %v151, %v158
    %v166 = vmul.f32 %v152, %v163
    %v167 = vld [vmem:[%s5] sm:$0xff]
    %v168 = vld [vmem:[%s5 + $0x8] sm:$0xff]
    %170 = vset.pattern.permute.xlu0 0
    %171 = vperm.xlu0 %170, %v167
    %v172 = vpop.permute.xlu0 %171
    %175 = vset.pattern.permute.xlu0 0
    %176 = vperm.xlu0 %175, %v168
    %v177 = vpop.permute.xlu0 %176
    %v179 = vadd.f32 %v165, %v172
    %v180 = vadd.f32 %v166, %v177
    %v181 = vadd.f32 %v179, %v180
    %v182 = vmax.f32 %v181, 0.0
    %184 = vset.pattern.permute.xlu0 0
    %185 = vperm.xlu0 %184, %v51
    %v186 = vpop.permute.xlu0 %185
    %v188 = vmul.f32 %v182, %v186
    %190 = vset.pattern.permute.xlu0 0
    %191 = vperm.xlu0 %190, %v59
    %v192 = vpop.permute.xlu0 %191
    %v194 = vadd.f32 %v188, %v192
    %195 = vst [vmem:[#allocation3 + $0x8] sm:$0xff] %v194
    %197 = vrot.lane.b32.xlu0 %v181, 2
    %v198 = vpop.permute.xlu0 %197
    %v200 = vadd.f32 %v37, %v198
    %v201 = vadd.f32 %v38, %v198
    %203 = vrot.lane.b32.xlu0 %v49, 2
    %v204 = vpop.permute.xlu0 %203
    %v206 = vmul.f32 %v200, %v204
    %v207 = vmul.f32 %v201, %v204
    %vm208 = vcmask 1047568
    %209 = vst.msk [vmem:[#allocation2] sm:$0xff] %vm208, %v206
    %vm210 = vcmask 15360
    %211 = vst.msk [vmem:[#allocation2 + $0x8] sm:$0xff] %vm210, %v207
    %v212 = vld [vmem:[#allocation2] sm:$0xff]
    %v213 = vld [vmem:[#allocation2 + $0x8] sm:$0xff]
    %216 = vrot.lane.b32.xlu0 %v212, 126
    %v217 = vpop.permute.xlu0 %216
    %218 = vrot.lane.b32.xlu0 %v213, 126
    %v219 = vpop.permute.xlu0 %218
    %v220 = vsel %vm88, %v217, %v219
    %222 = vrot.lane.b32.xlu0 %v212, 124
    %v223 = vpop.permute.xlu0 %222
    %224 = vrot.lane.b32.xlu0 %v213, 124
    %v225 = vpop.permute.xlu0 %224
    %v226 = vsel %vm104, %v223, %v225
    %s228 = scalar_lea.vmem %s2, 16
    %v229 = vld [vmem:[%s228] sm:$0xff]
    %v230 = vld [vmem:[%s228 + $0x8] sm:$0xff]
    %s231 = scalar_lea.vmem %s3, 16
    %v232 = vld [vmem:[%s231] sm:$0xff]
    %v233 = vld [vmem:[%s231 + $0x8] sm:$0xff]
    %235 = vset.pattern.permute.xlu0 0
    %236 = vperm.xlu0 %235, %v232
    %v237 = vpop.permute.xlu0 %236
    %240 = vset.pattern.permute.xlu0 0
    %241 = vperm.xlu0 %240, %v233
    %v242 = vpop.permute.xlu0 %241
    %v245 = vsel %vm121, %v229, 0
    %v248 = vsel %vm121, %v230, 0
    %250 = vmatpush.msra.mxu0 0.0
    %251 = vmatpush.msra.mxu0 0.0
    %252 = vmatpush.msra.mxu0 0.0
    %253 = vmatpush.msra.mxu0 0.0
    %254 = vmatpush.msra.mxu0 0.0
    %255 = vmatpush.msra.mxu0 0.0
    %256 = vmatpush.msra.mxu0 0.0
    %257 = vmatpush.msra.mxu0 0.0
    %258 = vmatpush.msra.mxu0 0.0
    %259 = vmatpush.msra.mxu0 0.0
    %260 = vmatpush.msra.mxu0 0.0
    %261 = vmatpush.msra.mxu0 0.0
    %262 = vmatpush.msra.mxu0 %v220
    %263 = vmatpush.msra.mxu0 %v226
    %264 = vmatpush.msra.mxu0 %v220
    %265 = vmatpush.msra.mxu0 %v212
    %266 = vmatmul.f32.gmra.mxu0 %v245
    %v267 = vpop.f32.mrf.mxu0
    %v268 = vadd.f32 %v237, %v267
    %269 = vmatmul.f32.gmra.mxu0 %v248
    %v270 = vpop.f32.mrf.mxu0
    %v271 = vadd.f32 %v242, %v270
    %272 = vdwg.mxu0
    %v273 = vmax.f32 %v268, 0.0
    %v274 = vmax.f32 %v271, 0.0
    %s275 = scalar_lea.vmem %s4, 16
    %v276 = vld [vmem:[%s275] sm:$0xff]
    %v277 = vld [vmem:[%s275 + $0x8] sm:$0xff]
    %279 = vset.pattern.permute.xlu0 0
    %280 = vperm.xlu0 %279, %v276
    %v281 = vpop.permute.xlu0 %280
    %284 = vset.pattern.permute.xlu0 0
    %285 = vperm.xlu0 %284, %v277
    %v286 = vpop.permute.xlu0 %285
    %v288 = vmul.f32 %v273, %v281
    %v289 = vmul.f32 %v274, %v286
    %s290 = scalar_lea.vmem %s5, 16
    %v291 = vld [vmem:[%s290] sm:$0xff]
    %v292 = vld [vmem:[%s290 + $0x8] sm:$0xff]
    %294 = vset.pattern.permute.xlu0 0
    %295 = vperm.xlu0 %294, %v291
    %v296 = vpop.permute.xlu0 %295
    %299 = vset.pattern.permute.xlu0 0
    %300 = vperm.xlu0 %299, %v292
    %v301 = vpop.permute.xlu0 %300
    %v303 = vadd.f32 %v288, %v296
    %v304 = vadd.f32 %v289, %v301
    %v305 = vadd.f32 %v303, %v304
    %v306 = vmax.f32 %v305, 0.0
    %308 = vset.pattern.permute.xlu0 0
    %309 = vperm.xlu0 %308, %v52
    %v310 = vpop.permute.xlu0 %309
    %v312 = vmul.f32 %v306, %v310
    %314 = vset.pattern.permute.xlu0 0
    %315 = vperm.xlu0 %314, %v60
    %v316 = vpop.permute.xlu0 %315
    %v318 = vadd.f32 %v312, %v316
    %319 = vst [vmem:[#allocation3 + $0x10] sm:$0xff] %v318
    %321 = vrot.lane.b32.xlu0 %v305, 2
    %v322 = vpop.permute.xlu0 %321
    %v324 = vadd.f32 %v39, %v322
    %v325 = vadd.f32 %v40, %v322
    %v326 = vmul.f32 %v324, %v204
    %v327 = vmul.f32 %v325, %v204
    %328 = vst.msk [vmem:[#allocation2] sm:$0xff] %vm208, %v326
    %329 = vst.msk [vmem:[#allocation2 + $0x8] sm:$0xff] %vm210, %v327
    %v330 = vld [vmem:[#allocation2] sm:$0xff]
    %v331 = vld [vmem:[#allocation2 + $0x8] sm:$0xff]
    %334 = vrot.lane.b32.xlu0 %v330, 126
    %v335 = vpop.permute.xlu0 %334
    %336 = vrot.lane.b32.xlu0 %v331, 126
    %v337 = vpop.permute.xlu0 %336
    %v338 = vsel %vm88, %v335, %v337
    %340 = vrot.lane.b32.xlu0 %v330, 124
    %v341 = vpop.permute.xlu0 %340
    %342 = vrot.lane.b32.xlu0 %v331, 124
    %v343 = vpop.permute.xlu0 %342
    %v344 = vsel %vm104, %v341, %v343
    %s346 = scalar_lea.vmem %s2, 32
    %v347 = vld [vmem:[%s346] sm:$0xff]
    %v348 = vld [vmem:[%s346 + $0x8] sm:$0xff]
    %s349 = scalar_lea.vmem %s3, 32
    %v350 = vld [vmem:[%s349] sm:$0xff]
    %v351 = vld [vmem:[%s349 + $0x8] sm:$0xff]
    %353 = vset.pattern.permute.xlu0 0
    %354 = vperm.xlu0 %353, %v350
    %v355 = vpop.permute.xlu0 %354
    %358 = vset.pattern.permute.xlu0 0
    %359 = vperm.xlu0 %358, %v351
    %v360 = vpop.permute.xlu0 %359
    %v363 = vsel %vm121, %v347, 0
    %v366 = vsel %vm121, %v348, 0
    %368 = vmatpush.msra.mxu0 0.0
    %369 = vmatpush.msra.mxu0 0.0
    %370 = vmatpush.msra.mxu0 0.0
    %371 = vmatpush.msra.mxu0 0.0
    %372 = vmatpush.msra.mxu0 0.0
    %373 = vmatpush.msra.mxu0 0.0
    %374 = vmatpush.msra.mxu0 0.0
    %375 = vmatpush.msra.mxu0 0.0
    %376 = vmatpush.msra.mxu0 0.0
    %377 = vmatpush.msra.mxu0 0.0
    %378 = vmatpush.msra.mxu0 0.0
    %379 = vmatpush.msra.mxu0 0.0
    %380 = vmatpush.msra.mxu0 %v338
    %381 = vmatpush.msra.mxu0 %v344
    %382 = vmatpush.msra.mxu0 %v338
    %383 = vmatpush.msra.mxu0 %v330
    %384 = vmatmul.f32.gmra.mxu0 %v363
    %v385 = vpop.f32.mrf.mxu0
    %v386 = vadd.f32 %v355, %v385
    %387 = vmatmul.f32.gmra.mxu0 %v366
    %v388 = vpop.f32.mrf.mxu0
    %v389 = vadd.f32 %v360, %v388
    %390 = vdwg.mxu0
    %v391 = vmax.f32 %v386, 0.0
    %v392 = vmax.f32 %v389, 0.0
    %s393 = scalar_lea.vmem %s4, 32
    %v394 = vld [vmem:[%s393] sm:$0xff]
    %v395 = vld [vmem:[%s393 + $0x8] sm:$0xff]
    %397 = vset.pattern.permute.xlu0 0
    %398 = vperm.xlu0 %397, %v394
    %v399 = vpop.permute.xlu0 %398
    %402 = vset.pattern.permute.xlu0 0
    %403 = vperm.xlu0 %402, %v395
    %v404 = vpop.permute.xlu0 %403
    %v406 = vmul.f32 %v391, %v399
    %v407 = vmul.f32 %v392, %v404
    %s408 = scalar_lea.vmem %s5, 32
    %v409 = vld [vmem:[%s408] sm:$0xff]
    %v410 = vld [vmem:[%s408 + $0x8] sm:$0xff]
    %412 = vset.pattern.permute.xlu0 0
    %413 = vperm.xlu0 %412, %v409
    %v414 = vpop.permute.xlu0 %413
    %417 = vset.pattern.permute.xlu0 0
    %418 = vperm.xlu0 %417, %v410
    %v419 = vpop.permute.xlu0 %418
    %v421 = vadd.f32 %v406, %v414
    %v422 = vadd.f32 %v407, %v419
    %v423 = vadd.f32 %v421, %v422
    %v424 = vmax.f32 %v423, 0.0
    %426 = vset.pattern.permute.xlu0 0
    %427 = vperm.xlu0 %426, %v53
    %v428 = vpop.permute.xlu0 %427
    %v430 = vmul.f32 %v424, %v428
    %432 = vset.pattern.permute.xlu0 0
    %433 = vperm.xlu0 %432, %v61
    %v434 = vpop.permute.xlu0 %433
    %v436 = vadd.f32 %v430, %v434
    %437 = vst [vmem:[#allocation3 + $0x18] sm:$0xff] %v436
    %439 = vrot.lane.b32.xlu0 %v423, 2
    %v440 = vpop.permute.xlu0 %439
    %v442 = vadd.f32 %v41, %v440
    %v443 = vadd.f32 %v42, %v440
    %v444 = vmul.f32 %v442, %v204
    %v445 = vmul.f32 %v443, %v204
    %446 = vst.msk [vmem:[#allocation2] sm:$0xff] %vm208, %v444
    %447 = vst.msk [vmem:[#allocation2 + $0x8] sm:$0xff] %vm210, %v445
    %v448 = vld [vmem:[#allocation2] sm:$0xff]
    %v449 = vld [vmem:[#allocation2 + $0x8] sm:$0xff]
    %452 = vrot.lane.b32.xlu0 %v448, 126
    %v453 = vpop.permute.xlu0 %452
    %454 = vrot.lane.b32.xlu0 %v449, 126
    %v455 = vpop.permute.xlu0 %454
    %v456 = vsel %vm88, %v453, %v455
    %458 = vrot.lane.b32.xlu0 %v448, 124
    %v459 = vpop.permute.xlu0 %458
    %460 = vrot.lane.b32.xlu0 %v449, 124
    %v461 = vpop.permute.xlu0 %460
    %v462 = vsel %vm104, %v459, %v461
    %s464 = scalar_lea.vmem %s2, 48
    %v465 = vld [vmem:[%s464] sm:$0xff]
    %v466 = vld [vmem:[%s464 + $0x8] sm:$0xff]
    %s467 = scalar_lea.vmem %s3, 48
    %v468 = vld [vmem:[%s467] sm:$0xff]
    %v469 = vld [vmem:[%s467 + $0x8] sm:$0xff]
    %471 = vset.pattern.permute.xlu0 0
    %472 = vperm.xlu0 %471, %v468
    %v473 = vpop.permute.xlu0 %472
    %476 = vset.pattern.permute.xlu0 0
    %477 = vperm.xlu0 %476, %v469
    %v478 = vpop.permute.xlu0 %477
    %v481 = vsel %vm121, %v465, 0
    %v484 = vsel %vm121, %v466, 0
    %486 = vmatpush.msra.mxu0 0.0
    %487 = vmatpush.msra.mxu0 0.0
    %488 = vmatpush.msra.mxu0 0.0
    %489 = vmatpush.msra.mxu0 0.0
    %490 = vmatpush.msra.mxu0 0.0
    %491 = vmatpush.msra.mxu0 0.0
    %492 = vmatpush.msra.mxu0 0.0
    %493 = vmatpush.msra.mxu0 0.0
    %494 = vmatpush.msra.mxu0 0.0
    %495 = vmatpush.msra.mxu0 0.0
    %496 = vmatpush.msra.mxu0 0.0
    %497 = vmatpush.msra.mxu0 0.0
    %498 = vmatpush.msra.mxu0 %v456
    %499 = vmatpush.msra.mxu0 %v462
    %500 = vmatpush.msra.mxu0 %v456
    %501 = vmatpush.msra.mxu0 %v448
    %502 = vmatmul.f32.gmra.mxu0 %v481
    %v503 = vpop.f32.mrf.mxu0
    %v504 = vadd.f32 %v473, %v503
    %505 = vmatmul.f32.gmra.mxu0 %v484
    %v506 = vpop.f32.mrf.mxu0
    %v507 = vadd.f32 %v478, %v506
    %508 = vdwg.mxu0
    %v509 = vmax.f32 %v504, 0.0
    %v510 = vmax.f32 %v507, 0.0
    %s511 = scalar_lea.vmem %s4, 48
    %v512 = vld [vmem:[%s511] sm:$0xff]
    %v513 = vld [vmem:[%s511 + $0x8] sm:$0xff]
    %515 = vset.pattern.permute.xlu0 0
    %516 = vperm.xlu0 %515, %v512
    %v517 = vpop.permute.xlu0 %516
    %520 = vset.pattern.permute.xlu0 0
    %521 = vperm.xlu0 %520, %v513
    %v522 = vpop.permute.xlu0 %521
    %v524 = vmul.f32 %v509, %v517
    %v525 = vmul.f32 %v510, %v522
    %s526 = scalar_lea.vmem %s5, 48
    %v527 = vld [vmem:[%s526] sm:$0xff]
    %v528 = vld [vmem:[%s526 + $0x8] sm:$0xff]
    %530 = vset.pattern.permute.xlu0 0
    %531 = vperm.xlu0 %530, %v527
    %v532 = vpop.permute.xlu0 %531
    %535 = vset.pattern.permute.xlu0 0
    %536 = vperm.xlu0 %535, %v528
    %v537 = vpop.permute.xlu0 %536
    %v539 = vadd.f32 %v524, %v532
    %v540 = vadd.f32 %v525, %v537
    %v541 = vadd.f32 %v539, %v540
    %v542 = vmax.f32 %v541, 0.0
    %544 = vset.pattern.permute.xlu0 0
    %545 = vperm.xlu0 %544, %v54
    %v546 = vpop.permute.xlu0 %545
    %v548 = vmul.f32 %v542, %v546
    %550 = vset.pattern.permute.xlu0 0
    %551 = vperm.xlu0 %550, %v62
    %v552 = vpop.permute.xlu0 %551
    %v554 = vadd.f32 %v548, %v552
    %555 = vst [vmem:[#allocation3 + $0x20] sm:$0xff] %v554
    %557 = vrot.lane.b32.xlu0 %v541, 2
    %v558 = vpop.permute.xlu0 %557
    %v560 = vadd.f32 %v43, %v558
    %v561 = vadd.f32 %v44, %v558
    %v562 = vmul.f32 %v560, %v204
    %v563 = vmul.f32 %v561, %v204
    %564 = vst.msk [vmem:[#allocation2] sm:$0xff] %vm208, %v562
    %565 = vst.msk [vmem:[#allocation2 + $0x8] sm:$0xff] %vm210, %v563
    %v566 = vld [vmem:[#allocation2] sm:$0xff]
    %v567 = vld [vmem:[#allocation2 + $0x8] sm:$0xff]
    %570 = vrot.lane.b32.xlu0 %v566, 126
    %v571 = vpop.permute.xlu0 %570
    %572 = vrot.lane.b32.xlu0 %v567, 126
    %v573 = vpop.permute.xlu0 %572
    %v574 = vsel %vm88, %v571, %v573
    %576 = vrot.lane.b32.xlu0 %v566, 124
    %v577 = vpop.permute.xlu0 %576
    %578 = vrot.lane.b32.xlu0 %v567, 124
    %v579 = vpop.permute.xlu0 %578
    %v580 = vsel %vm104, %v577, %v579
    %s582 = scalar_lea.vmem %s2, 64
    %v583 = vld [vmem:[%s582] sm:$0xff]
    %v584 = vld [vmem:[%s582 + $0x8] sm:$0xff]
    %s585 = scalar_lea.vmem %s3, 64
    %v586 = vld [vmem:[%s585] sm:$0xff]
    %v587 = vld [vmem:[%s585 + $0x8] sm:$0xff]
    %589 = vset.pattern.permute.xlu0 0
    %590 = vperm.xlu0 %589, %v586
    %v591 = vpop.permute.xlu0 %590
    %594 = vset.pattern.permute.xlu0 0
    %595 = vperm.xlu0 %594, %v587
    %v596 = vpop.permute.xlu0 %595
    %v599 = vsel %vm121, %v583, 0
    %v602 = vsel %vm121, %v584, 0
    %604 = vmatpush.msra.mxu0 0.0
    %605 = vmatpush.msra.mxu0 0.0
    %606 = vmatpush.msra.mxu0 0.0
    %607 = vmatpush.msra.mxu0 0.0
    %608 = vmatpush.msra.mxu0 0.0
    %609 = vmatpush.msra.mxu0 0.0
    %610 = vmatpush.msra.mxu0 0.0
    %611 = vmatpush.msra.mxu0 0.0
    %612 = vmatpush.msra.mxu0 0.0
    %613 = vmatpush.msra.mxu0 0.0
    %614 = vmatpush.msra.mxu0 0.0
    %615 = vmatpush.msra.mxu0 0.0
    %616 = vmatpush.msra.mxu0 %v574
    %617 = vmatpush.msra.mxu0 %v580
    %618 = vmatpush.msra.mxu0 %v574
    %619 = vmatpush.msra.mxu0 %v566
    %620 = vmatmul.f32.gmra.mxu0 %v599
    %v621 = vpop.f32.mrf.mxu0
    %v622 = vadd.f32 %v591, %v621
    %623 = vmatmul.f32.gmra.mxu0 %v602
    %v624 = vpop.f32.mrf.mxu0
    %v625 = vadd.f32 %v596, %v624
    %626 = vdwg.mxu0
    %v627 = vmax.f32 %v622, 0.0
    %v628 = vmax.f32 %v625, 0.0
    %s629 = scalar_lea.vmem %s4, 64
    %v630 = vld [vmem:[%s629] sm:$0xff]
    %v631 = vld [vmem:[%s629 + $0x8] sm:$0xff]
    %633 = vset.pattern.permute.xlu0 0
    %634 = vperm.xlu0 %633, %v630
    %v635 = vpop.permute.xlu0 %634
    %638 = vset.pattern.permute.xlu0 0
    %639 = vperm.xlu0 %638, %v631
    %v640 = vpop.permute.xlu0 %639
    %v642 = vmul.f32 %v627, %v635
    %v643 = vmul.f32 %v628, %v640
    %s644 = scalar_lea.vmem %s5, 64
    %v645 = vld [vmem:[%s644] sm:$0xff]
    %v646 = vld [vmem:[%s644 + $0x8] sm:$0xff]
    %648 = vset.pattern.permute.xlu0 0
    %649 = vperm.xlu0 %648, %v645
    %v650 = vpop.permute.xlu0 %649
    %653 = vset.pattern.permute.xlu0 0
    %654 = vperm.xlu0 %653, %v646
    %v655 = vpop.permute.xlu0 %654
    %v657 = vadd.f32 %v642, %v650
    %v658 = vadd.f32 %v643, %v655
    %v659 = vadd.f32 %v657, %v658
    %v660 = vmax.f32 %v659, 0.0
    %662 = vset.pattern.permute.xlu0 0
    %663 = vperm.xlu0 %662, %v55
    %v664 = vpop.permute.xlu0 %663
    %v666 = vmul.f32 %v660, %v664
    %668 = vset.pattern.permute.xlu0 0
    %669 = vperm.xlu0 %668, %v63
    %v670 = vpop.permute.xlu0 %669
    %v672 = vadd.f32 %v666, %v670
    %673 = vst [vmem:[#allocation3 + $0x28] sm:$0xff] %v672
    %675 = vrot.lane.b32.xlu0 %v659, 2
    %v676 = vpop.permute.xlu0 %675
    %v678 = vadd.f32 %v45, %v676
    %v679 = vadd.f32 %v46, %v676
    %v680 = vmul.f32 %v678, %v204
    %v681 = vmul.f32 %v679, %v204
    %682 = vst.msk [vmem:[#allocation2] sm:$0xff] %vm208, %v680
    %683 = vst.msk [vmem:[#allocation2 + $0x8] sm:$0xff] %vm210, %v681
    %v684 = vld [vmem:[#allocation2] sm:$0xff]
    %v685 = vld [vmem:[#allocation2 + $0x8] sm:$0xff]
    %688 = vrot.lane.b32.xlu0 %v684, 126
    %v689 = vpop.permute.xlu0 %688
    %690 = vrot.lane.b32.xlu0 %v685, 126
    %v691 = vpop.permute.xlu0 %690
    %v692 = vsel %vm88, %v689, %v691
    %694 = vrot.lane.b32.xlu0 %v684, 124
    %v695 = vpop.permute.xlu0 %694
    %696 = vrot.lane.b32.xlu0 %v685, 124
    %v697 = vpop.permute.xlu0 %696
    %v698 = vsel %vm104, %v695, %v697
    %s700 = scalar_lea.vmem %s2, 80
    %v701 = vld [vmem:[%s700] sm:$0xff]
    %v702 = vld [vmem:[%s700 + $0x8] sm:$0xff]
    %s703 = scalar_lea.vmem %s3, 80
    %v704 = vld [vmem:[%s703] sm:$0xff]
    %v705 = vld [vmem:[%s703 + $0x8] sm:$0xff]
    %707 = vset.pattern.permute.xlu0 0
    %708 = vperm.xlu0 %707, %v704
    %v709 = vpop.permute.xlu0 %708
    %712 = vset.pattern.permute.xlu0 0
    %713 = vperm.xlu0 %712, %v705
    %v714 = vpop.permute.xlu0 %713
    %v717 = vsel %vm121, %v701, 0
    %v720 = vsel %vm121, %v702, 0
    %722 = vmatpush.msra.mxu0 0.0
    %723 = vmatpush.msra.mxu0 0.0
    %724 = vmatpush.msra.mxu0 0.0
    %725 = vmatpush.msra.mxu0 0.0
    %726 = vmatpush.msra.mxu0 0.0
    %727 = vmatpush.msra.mxu0 0.0
    %728 = vmatpush.msra.mxu0 0.0
    %729 = vmatpush.msra.mxu0 0.0
    %730 = vmatpush.msra.mxu0 0.0
    %731 = vmatpush.msra.mxu0 0.0
    %732 = vmatpush.msra.mxu0 0.0
    %733 = vmatpush.msra.mxu0 0.0
    %734 = vmatpush.msra.mxu0 %v692
    %735 = vmatpush.msra.mxu0 %v698
    %736 = vmatpush.msra.mxu0 %v692
    %737 = vmatpush.msra.mxu0 %v684
    %738 = vmatmul.f32.gmra.mxu0 %v717
    %v739 = vpop.f32.mrf.mxu0
    %v740 = vadd.f32 %v709, %v739
    %741 = vmatmul.f32.gmra.mxu0 %v720
    %v742 = vpop.f32.mrf.mxu0
    %v743 = vadd.f32 %v714, %v742
    %744 = vdwg.mxu0
    %v745 = vmax.f32 %v740, 0.0
    %v746 = vmax.f32 %v743, 0.0
    %s747 = scalar_lea.vmem %s4, 80
    %v748 = vld [vmem:[%s747] sm:$0xff]
    %v749 = vld [vmem:[%s747 + $0x8] sm:$0xff]
    %751 = vset.pattern.permute.xlu0 0
    %752 = vperm.xlu0 %751, %v748
    %v753 = vpop.permute.xlu0 %752
    %756 = vset.pattern.permute.xlu0 0
    %757 = vperm.xlu0 %756, %v749
    %v758 = vpop.permute.xlu0 %757
    %v760 = vmul.f32 %v745, %v753
    %v761 = vmul.f32 %v746, %v758
    %s762 = scalar_lea.vmem %s5, 80
    %v763 = vld [vmem:[%s762] sm:$0xff]
    %v764 = vld [vmem:[%s762 + $0x8] sm:$0xff]
    %766 = vset.pattern.permute.xlu0 0
    %767 = vperm.xlu0 %766, %v763
    %v768 = vpop.permute.xlu0 %767
    %771 = vset.pattern.permute.xlu0 0
    %772 = vperm.xlu0 %771, %v764
    %v773 = vpop.permute.xlu0 %772
    %v775 = vadd.f32 %v760, %v768
    %v776 = vadd.f32 %v761, %v773
    %v777 = vadd.f32 %v775, %v776
    %v778 = vmax.f32 %v777, 0.0
    %780 = vset.pattern.permute.xlu0 0
    %781 = vperm.xlu0 %780, %v56
    %v782 = vpop.permute.xlu0 %781
    %v784 = vmul.f32 %v778, %v782
    %786 = vset.pattern.permute.xlu0 0
    %787 = vperm.xlu0 %786, %v64
    %v788 = vpop.permute.xlu0 %787
    %v790 = vadd.f32 %v784, %v788
    %791 = vst [vmem:[#allocation3 + $0x30] sm:$0xff] %v790
    %793 = vrot.lane.b32.xlu0 %v777, 2
    %v794 = vpop.permute.xlu0 %793
    %v796 = vadd.f32 %v47, %v794
    %v797 = vadd.f32 %v48, %v794
    %v798 = vmul.f32 %v796, %v204
    %v799 = vmul.f32 %v797, %v204
    %800 = vst.msk [vmem:[#allocation2] sm:$0xff] %vm208, %v798
    %801 = vst.msk [vmem:[#allocation2 + $0x8] sm:$0xff] %vm210, %v799
    %v802 = vld [vmem:[#allocation2] sm:$0xff]
    %v803 = vld [vmem:[#allocation2 + $0x8] sm:$0xff]
    %806 = vrot.lane.b32.xlu0 %v802, 126
    %v807 = vpop.permute.xlu0 %806
    %808 = vrot.lane.b32.xlu0 %v803, 126
    %v809 = vpop.permute.xlu0 %808
    %v810 = vsel %vm88, %v807, %v809
    %812 = vrot.lane.b32.xlu0 %v802, 124
    %v813 = vpop.permute.xlu0 %812
    %814 = vrot.lane.b32.xlu0 %v803, 124
    %v815 = vpop.permute.xlu0 %814
    %v816 = vsel %vm104, %v813, %v815
    %s818 = scalar_lea.vmem %s2, 96
    %v819 = vld [vmem:[%s818] sm:$0xff]
    %v820 = vld [vmem:[%s818 + $0x8] sm:$0xff]
    %s821 = scalar_lea.vmem %s3, 96
    %v822 = vld [vmem:[%s821] sm:$0xff]
    %v823 = vld [vmem:[%s821 + $0x8] sm:$0xff]
    %825 = vset.pattern.permute.xlu0 0
    %826 = vperm.xlu0 %825, %v822
    %v827 = vpop.permute.xlu0 %826
    %830 = vset.pattern.permute.xlu0 0
    %831 = vperm.xlu0 %830, %v823
    %v832 = vpop.permute.xlu0 %831
    %v835 = vsel %vm121, %v819, 0
    %v838 = vsel %vm121, %v820, 0
    %840 = vmatpush.msra.mxu0 0.0
    %841 = vmatpush.msra.mxu0 0.0
    %842 = vmatpush.msra.mxu0 0.0
    %843 = vmatpush.msra.mxu0 0.0
    %844 = vmatpush.msra.mxu0 0.0
    %845 = vmatpush.msra.mxu0 0.0
    %846 = vmatpush.msra.mxu0 0.0
    %847 = vmatpush.msra.mxu0 0.0
    %848 = vmatpush.msra.mxu0 0.0
    %849 = vmatpush.msra.mxu0 0.0
    %850 = vmatpush.msra.mxu0 0.0
    %851 = vmatpush.msra.mxu0 0.0
    %852 = vmatpush.msra.mxu0 %v810
    %853 = vmatpush.msra.mxu0 %v816
    %854 = vmatpush.msra.mxu0 %v810
    %855 = vmatpush.msra.mxu0 %v802
    %856 = vmatmul.f32.gmra.mxu0 %v835
    %v857 = vpop.f32.mrf.mxu0
    %v858 = vadd.f32 %v827, %v857
    %859 = vmatmul.f32.gmra.mxu0 %v838
    %v860 = vpop.f32.mrf.mxu0
    %v861 = vadd.f32 %v832, %v860
    %862 = vdwg.mxu0
    %v863 = vmax.f32 %v858, 0.0
    %v864 = vmax.f32 %v861, 0.0
    %s865 = scalar_lea.vmem %s4, 96
    %v866 = vld [vmem:[%s865] sm:$0xff]
    %v867 = vld [vmem:[%s865 + $0x8] sm:$0xff]
    %869 = vset.pattern.permute.xlu0 0
    %870 = vperm.xlu0 %869, %v866
    %v871 = vpop.permute.xlu0 %870
    %874 = vset.pattern.permute.xlu0 0
    %875 = vperm.xlu0 %874, %v867
    %v876 = vpop.permute.xlu0 %875
    %v878 = vmul.f32 %v863, %v871
    %v879 = vmul.f32 %v864, %v876
    %s880 = scalar_lea.vmem %s5, 96
    %v881 = vld [vmem:[%s880] sm:$0xff]
    %v882 = vld [vmem:[%s880 + $0x8] sm:$0xff]
    %884 = vset.pattern.permute.xlu0 0
    %885 = vperm.xlu0 %884, %v881
    %v886 = vpop.permute.xlu0 %885
    %889 = vset.pattern.permute.xlu0 0
    %890 = vperm.xlu0 %889, %v882
    %v891 = vpop.permute.xlu0 %890
    %v893 = vadd.f32 %v878, %v886
    %v894 = vadd.f32 %v879, %v891
    %v895 = vadd.f32 %v893, %v894
    %v896 = vmax.f32 %v895, 0.0
    %898 = vset.pattern.permute.xlu0 0
    %899 = vperm.xlu0 %898, %v57
    %v900 = vpop.permute.xlu0 %899
    %v902 = vmul.f32 %v896, %v900
    %904 = vset.pattern.permute.xlu0 0
    %905 = vperm.xlu0 %904, %v65
    %v906 = vpop.permute.xlu0 %905
    %v908 = vadd.f32 %v902, %v906
    %909 = vst [vmem:[#allocation3 + $0x38] sm:$0xff] %v908
    // Predicated region
    $region34: #{tpu_custom_call.1} parent=1 // pred_check
      _
    $region35: #{tpu_custom_call.1} parent=1 // pred_check_branch
      %911 = sbr.rel (0) target = $region37
    $region36: #{tpu_custom_call.1} parent=1 // pred_region
      %913 = vsyncadd [#allocation4], 0
      %s914 = sshll.u32 [#allocation3], 4
      %s915 = int_to_ptr.vmem [resolvable:$true] %s914
      %s916 = sshll.u32 %s8, 4
      %s917 = int_to_ptr.hbm [resolvable:$true] %s916
      %922 = dma.vmem_to_hbm [thread:$0]  %s915, 1024, %s917, [#allocation4], 128, 128, 8
    $region37: #{tpu_custom_call.1} parent=1 // pred_fallthru
      _
    // Predicated region
    $region38: #{tpu_custom_call.1} parent=1 // pred_check
      _
    $region39: #{tpu_custom_call.1} parent=1 // pred_check_branch
      %924 = sbr.rel (0) target = $region41
    $region40: #{tpu_custom_call.1} parent=1 // pred_region
      %926 = dma.done [#allocation4], 1024
    $region41: #{tpu_custom_call.1} parent=1 // pred_fallthru
      _
    %927 = vsyncpa [#allocation4], 1

</llo_original>
